<compile_context>
chip_gen: v7x
topology: tpu7x:2x2x1
jax: 0.10.0
libtpu: 0.0.40
codegen_flags: <defaults>
</compile_context>

<pallas_src>
import functools
import numpy as np
import jax
import jax.numpy as jnp
from jax.experimental import pallas as pl
from jax.experimental.pallas import tpu as pltpu

# ---------------------------------------------------------------- constants
N, C_IN, H, W = 2, 4, 16, 16
C_OUT = 8
CA_HID = C_OUT // 2
SA_K = 7                          # 7x7 spatial-attention conv
PAD = (SA_K - 1) // 2             # 3
LANES = W * C_OUT                 # 128  (lane-dense feature width)
RWC = W * C_IN                    # 64   conv Toeplitz strip rows
RWS = 2 * W                       # 32   SA Toeplitz strip rows ([sum | max])
PROW = 8                          # sublane-aligned data offset inside pcomb
PCROWS = 32                       # pcomb rows (>= PROW - PAD + SA_K - 1 + H = 27)

# ---- weight-slab row offsets (every sub-block starts on an 8-row boundary) ----
R_BC = 0                          # conv Toeplitz, 3*RWC = 192 rows
R_CBIAS = R_BC + 3 * RWC          # 192  conv bias row (lane-broadcast over w)
R_BS = R_CBIAS + 8                # 200  SA Toeplitz, 7*RWS = 224 rows
R_SBIAS = R_BS + SA_K * RWS       # 424  SA bias row
R_P = R_SBIAS + 8                 # 432  lane permutation (w,c)->(c,w), 128 rows
R_RSUM = R_P + LANES              # 560  (N, N*H) batch row-sum selector
R_REXP = R_RSUM + 8               # 568  (N*H, N) batch broadcast selector
R_T = R_REXP + N * H              # 600  (C_OUT, LANES) channel broadcast selector
R_W1 = R_T + C_OUT                # 608  CA MLP w1 (scaled by 1/(H*W))
R_B1 = R_W1 + 8                   # 616
R_W2 = R_B1 + 8                   # 624
R_B2 = R_W2 + 8                   # 632
SLAB_ROWS = R_B2 + 8              # 640


# ---------------------------------------------------------------- fused kernel
def fused_kernel(x_ref, w_ref, o_ref, pcomb):
    # ---- conv1: 3x3 SAME conv + bias + ReLU, born lane-dense (32,128) -----
    conv = None
    for kh in range(3):
        a = x_ref[:, kh:kh + H, :].reshape(N * H, RWC)          # (32,64)
        d = jnp.dot(a, w_ref[R_BC + kh * RWC:R_BC + (kh + 1) * RWC, :],
                    preferred_element_type=jnp.float32)          # (32,128)
        conv = d if conv is None else conv + d
    feat = jnp.maximum(conv + w_ref[R_CBIAS:R_CBIAS + 1, :], 0.0)

    # ---- channel attention: GAP -> MLP -> sigmoid -> broadcast gate --------
    # residue-class (mod C_OUT) roll-sum tree: lane l ends with sum over all w
    # for channel l%8 (direction-agnostic).
    s = feat
    for sh in (C_OUT, 2 * C_OUT, 4 * C_OUT, 8 * C_OUT):          # 8,16,32,64
        s = s + pltpu.roll(s, shift=sh, axis=1)
    chsum = s[:, 0:C_OUT]                                        # (32,8)
    tot = jnp.dot(w_ref[R_RSUM:R_RSUM + N, 0:N * H], chsum,
                  preferred_element_type=jnp.float32)            # (2,8) sums; 1/HW in w1
    hid = jnp.maximum(
        jnp.dot(tot, w_ref[R_W1:R_W1 + C_OUT, 0:CA_HID],
                preferred_element_type=jnp.float32)
        + w_ref[R_B1:R_B1 + 1, 0:CA_HID], 0.0)                   # (2,4)
    g = jax.nn.sigmoid(
        jnp.dot(hid, w_ref[R_W2:R_W2 + CA_HID, 0:C_OUT],
                preferred_element_type=jnp.float32)
        + w_ref[R_B2:R_B2 + 1, 0:C_OUT])                         # (2,8)
    gn = jnp.dot(w_ref[R_REXP:R_REXP + N * H, 0:N], g,
                 preferred_element_type=jnp.float32)             # (32,8)
    gate_c = jnp.dot(gn, w_ref[R_T:R_T + C_OUT, :],
                     preferred_element_type=jnp.float32)         # (32,128)
    feat = feat * gate_c                                         # channel-gated

    # ---- spatial attention: channel sum/max -> 7x7 conv (row Toeplitz) -----
    # permute lanes (w*8+c) -> (c*16+w) so channel reductions are mod-16
    # residue classes (roll trees, slice at lane 0 needs no shift).
    y = jnp.dot(feat, w_ref[R_P:R_P + LANES, :],
                preferred_element_type=jnp.float32)              # (32,128)
    r = pltpu.roll(y, shift=W, axis=1)
    ssum, smax = y + r, jnp.maximum(y, r)
    ssum = ssum + pltpu.roll(ssum, shift=2 * W, axis=1)
    smax = jnp.maximum(smax, pltpu.roll(smax, shift=2 * W, axis=1))
    ssum = ssum + pltpu.roll(ssum, shift=4 * W, axis=1)
    smax = jnp.maximum(smax, pltpu.roll(smax, shift=4 * W, axis=1))
    # lanes 0..15: channel SUM / MAX per w (the 1/C_OUT mean scale lives in Bs)

    pcomb[...] = jnp.zeros_like(pcomb)                           # (2,32,32)
    pcomb[:, PROW:PROW + H, 0:W] = ssum[:, 0:W].reshape(N, H, W)
    pcomb[:, PROW:PROW + H, W:2 * W] = smax[:, 0:W].reshape(N, H, W)

    sa = None
    for kh in range(SA_K):
        r0 = PROW - PAD + kh
        a = pcomb[:, r0:r0 + H, :].reshape(N * H, RWS)           # (32,32)
        d = jnp.dot(a, w_ref[R_BS + kh * RWS:R_BS + (kh + 1) * RWS, :],
                    preferred_element_type=jnp.float32)          # (32,128)
        sa = d if sa is None else sa + d
    gate_s = jax.nn.sigmoid(sa + w_ref[R_SBIAS:R_SBIAS + 1, :])  # channel-replicated
    o_ref[...] = feat * gate_s                                   # single unmasked (32,128) store


# ---------------------------------------------------------------- host-side packing
def pack_params(p):
    """Pack every weight / Toeplitz / selector matrix into one (640,128) f32 slab."""
    slab = np.zeros((SLAB_ROWS, LANES), np.float32)

    # conv1 row-Toeplitz (w-padding folded into the matrix)
    wc = np.asarray(p['w_conv'], np.float32)                     # (3,3,C_IN,C_OUT)
    for kh in range(3):
        for j in range(W):
            for w in range(W):
                kw = j - w + 1
                if 0 <= kw < 3:
                    r = R_BC + kh * RWC + j * C_IN
                    slab[r:r + C_IN, w * C_OUT:(w + 1) * C_OUT] = wc[kh, kw]
    slab[R_CBIAS, :] = np.tile(np.asarray(p['b_conv'], np.float32).reshape(C_OUT), W)

    # SA row-Toeplitz: channel-replicated columns, mean scale folded in
    ws = np.asarray(p['w_sa'], np.float32)                       # (7,7,2)
    for kh in range(SA_K):
        for j in range(W):
            for w in range(W):
                kw = j - w + PAD
                if 0 <= kw < SA_K:
                    slab[R_BS + kh * RWS + j,
                         w * C_OUT:(w + 1) * C_OUT] = ws[kh, kw, 0] / C_OUT
                    slab[R_BS + kh * RWS + W + j,
                         w * C_OUT:(w + 1) * C_OUT] = ws[kh, kw, 1]
    slab[R_SBIAS, :] = float(np.asarray(p['b_sa']).reshape(-1)[0])

    # lane permutation (w*8+c) -> (c*16+w)
    for w in range(W):
        for co in range(C_OUT):
            slab[R_P + w * C_OUT + co, co * W + w] = 1.0
    # batch row-sum / broadcast selectors
    for n in range(N):
        slab[R_RSUM + n, n * H:(n + 1) * H] = 1.0
        slab[R_REXP + n * H:R_REXP + (n + 1) * H, n] = 1.0
    # channel broadcast selector
    for co in range(C_OUT):
        slab[R_T + co, co::C_OUT] = 1.0
    # CA MLP (GAP 1/(H*W) folded into w1)
    slab[R_W1:R_W1 + C_OUT, 0:CA_HID] = np.asarray(p['w1'], np.float32) / float(H * W)
    slab[R_B1, 0:CA_HID] = np.asarray(p['b1'], np.float32).reshape(-1)
    slab[R_W2:R_W2 + CA_HID, 0:C_OUT] = np.asarray(p['w2'], np.float32)
    slab[R_B2, 0:C_OUT] = np.asarray(p['b2'], np.float32).reshape(-1)
    return jnp.asarray(slab)


def _fused_call(x_pad, slab):
    return pl.pallas_call(
        fused_kernel,
        out_shape=jax.ShapeDtypeStruct((N * H, LANES), jnp.float32),
        grid=(1,),
        in_specs=[
            pl.BlockSpec((N, H + 2, RWC), lambda i: (0, 0, 0)),     # h-padded input rows
            pl.BlockSpec((SLAB_ROWS, LANES), lambda i: (0, 0)),     # packed weight slab
        ],
        out_specs=pl.BlockSpec((N * H, LANES), lambda i: (0, 0)),
        scratch_shapes=[pltpu.VMEM((N, PCROWS, RWS), jnp.float32)],  # padded [sum|max] maps
        compiler_params=pltpu.CompilerParams(
            dimension_semantics=("arbitrary",)),
    )(x_pad, slab)


# ---------------------------------------------------- FeatureExtractor forward
@functools.partial(jax.jit, static_argnames=('extracted_layers',))
def feature_extractor_forward(x_nchw, slab, extracted_layers=('sa',)):
    # Mirrors the torch loop: conv1 -> x = ca(x)*x -> x = sa(x)*x -> (fc flattens).
    x_nhwc = jnp.transpose(x_nchw, (0, 2, 3, 1)).astype(jnp.float32)
    x_rows = x_nhwc.reshape(N, H, W * C_IN)
    x_pad = jnp.pad(x_rows, ((0, 0), (1, 1), (0, 0)))   # h zero-pad; w-pad is in the Toeplitz
    sa_flat = _fused_call(x_pad, slab)                  # (N*H, W*C_OUT) lane-dense
    sa_nchw = jnp.transpose(sa_flat.reshape(N, H, W, C_OUT), (0, 3, 1, 2))
    if 'sa' in extracted_layers:
        return sa_nchw
    if 'fc' in extracted_layers:                        # 'fc' only flattens in the torch code
        return sa_nchw.reshape(N, -1)
    # TODO(synk): extraction at 'conv1'/'ca' would need extra kernel outputs.
    return sa_nchw


# ---------------------------------------------------------------- reference
def reference_forward(x_nchw, p):
    x = jnp.transpose(x_nchw, (0, 2, 3, 1)).astype(jnp.float32)
    feat = jax.lax.conv_general_dilated(
        x, p['w_conv'], (1, 1), 'SAME',
        dimension_numbers=('NHWC', 'HWIO', 'NHWC')) + p['b_conv'].reshape(1, 1, 1, C_OUT)
    feat = jnp.maximum(feat, 0.0)
    m = feat.mean(axis=(1, 2))
    h = jnp.maximum(m @ p['w1'] + p['b1'], 0.0)
    g = jax.nn.sigmoid(h @ p['w2'] + p['b2'])
    feat = feat * g[:, None, None, :]
    mean_c = feat.mean(axis=-1, keepdims=True)
    max_c = feat.max(axis=-1, keepdims=True)
    sa_in = jnp.concatenate([mean_c, max_c], axis=-1)
    sa = jax.lax.conv_general_dilated(
        sa_in, p['w_sa'][..., None], (1, 1), 'SAME',
        dimension_numbers=('NHWC', 'HWIO', 'NHWC')) + p['b_sa'][0]
    gate = jax.nn.sigmoid(sa)
    out = feat * gate
    return jnp.transpose(out, (0, 3, 1, 2))             # NCHW


# ---------------------------------------------------------------- main
if __name__ == "__main__":
    key = jax.random.PRNGKey(0)
    ks = jax.random.split(key, 9)
    params = {
        'w_conv': 0.1 * jax.random.normal(ks[0], (3, 3, C_IN, C_OUT), jnp.float32),
        'b_conv': 0.1 * jax.random.normal(ks[1], (1, C_OUT), jnp.float32),
        'w1': 0.2 * jax.random.normal(ks[2], (C_OUT, CA_HID), jnp.float32),
        'b1': 0.1 * jax.random.normal(ks[3], (1, CA_HID), jnp.float32),
        'w2': 0.2 * jax.random.normal(ks[4], (CA_HID, C_OUT), jnp.float32),
        'b2': 0.1 * jax.random.normal(ks[5], (1, C_OUT), jnp.float32),
        'w_sa': 0.1 * jax.random.normal(ks[6], (SA_K, SA_K, 2), jnp.float32),
        'b_sa': 0.1 * jax.random.normal(ks[7], (1,), jnp.float32),
    }
    x = jax.random.normal(ks[8], (N, C_IN, H, W), jnp.float32)   # NCHW input

    slab = pack_params(params)                                   # one-time host packing
    out = feature_extractor_forward(x, slab, extracted_layers=('sa',))
    out = jax.block_until_ready(out)                             # NCHW (2,8,16,16)

    ref = reference_forward(x, params)
    np.testing.assert_allclose(np.asarray(out), np.asarray(ref),
                               rtol=1e-3, atol=1e-3)
    print("KERNEL_OK")
</pallas_src>

<mosaic_0001>
module attributes {stable_mosaic.version = 11 : i64} {
  func.func @fused_kernel(%arg0: i32, %arg1: memref<2x18x64xf32, #tpu.memory_space<vmem>>, %arg2: memref<640x128xf32, #tpu.memory_space<vmem>>, %arg3: memref<32x128xf32, #tpu.memory_space<vmem>>, %arg4: memref<2x32x32xf32, #tpu.memory_space<vmem>>) attributes {dimension_semantics = [#tpu.dimension_semantics<arbitrary>], iteration_bounds = array<i64: 1>, scalar_prefetch = 0 : i64, scratch_operands = 1 : i64, tpu.core_type = #tpu.core_type<tc>, window_params = [{pipeline_mode = #tpu.pipeline_mode<synchronous>, transform_indices = @transform_0, window_bounds = array<i64: 2, 18, 64>}, {pipeline_mode = #tpu.pipeline_mode<synchronous>, transform_indices = @transform_1, window_bounds = array<i64: 640, 128>}, {pipeline_mode = #tpu.pipeline_mode<synchronous>, transform_indices = @transform_2, window_bounds = array<i64: 32, 128>}]} {
    %c0 = arith.constant 0 : index
    %c0_0 = arith.constant 0 : index
    %c0_1 = arith.constant 0 : index
    %0 = vector.load %arg1[%c0, %c0_0, %c0_1] : memref<2x18x64xf32, #tpu.memory_space<vmem>>, vector<2x16x64xf32>
    %1 = vector.shape_cast %0 : vector<2x16x64xf32> to vector<32x64xf32>
    %c0_2 = arith.constant 0 : index
    %c0_3 = arith.constant 0 : index
    %2 = vector.load %arg2[%c0_2, %c0_3] : memref<640x128xf32, #tpu.memory_space<vmem>>, vector<64x128xf32>
    %cst = arith.constant dense<0.000000e+00> : vector<32x128xf32>
    %3 = tpu.matmul %1, %2, %cst {dimension_numbers = #tpu.dot_dimension_numbers<[1], [0], [0], [1], [0, 0, 1, 1], [], []>} : vector<32x64xf32>, vector<64x128xf32>, vector<32x128xf32> -> vector<32x128xf32>
    %c0_4 = arith.constant 0 : index
    %c1 = arith.constant 1 : index
    %c0_5 = arith.constant 0 : index
    %4 = vector.load %arg1[%c0_4, %c1, %c0_5] : memref<2x18x64xf32, #tpu.memory_space<vmem>>, vector<2x16x64xf32>
    %5 = vector.shape_cast %4 : vector<2x16x64xf32> to vector<32x64xf32>
    %c64 = arith.constant 64 : index
    %c0_6 = arith.constant 0 : index
    %6 = vector.load %arg2[%c64, %c0_6] : memref<640x128xf32, #tpu.memory_space<vmem>>, vector<64x128xf32>
    %cst_7 = arith.constant dense<0.000000e+00> : vector<32x128xf32>
    %7 = tpu.matmul %5, %6, %cst_7 {dimension_numbers = #tpu.dot_dimension_numbers<[1], [0], [0], [1], [0, 0, 1, 1], [], []>} : vector<32x64xf32>, vector<64x128xf32>, vector<32x128xf32> -> vector<32x128xf32>
    %8 = arith.addf %3, %7 : vector<32x128xf32>
    %c0_8 = arith.constant 0 : index
    %c2 = arith.constant 2 : index
    %c0_9 = arith.constant 0 : index
    %9 = vector.load %arg1[%c0_8, %c2, %c0_9] : memref<2x18x64xf32, #tpu.memory_space<vmem>>, vector<2x16x64xf32>
    %10 = vector.shape_cast %9 : vector<2x16x64xf32> to vector<32x64xf32>
    %c128 = arith.constant 128 : index
    %c0_10 = arith.constant 0 : index
    %11 = vector.load %arg2[%c128, %c0_10] : memref<640x128xf32, #tpu.memory_space<vmem>>, vector<64x128xf32>
    %cst_11 = arith.constant dense<0.000000e+00> : vector<32x128xf32>
    %12 = tpu.matmul %10, %11, %cst_11 {dimension_numbers = #tpu.dot_dimension_numbers<[1], [0], [0], [1], [0, 0, 1, 1], [], []>} : vector<32x64xf32>, vector<64x128xf32>, vector<32x128xf32> -> vector<32x128xf32>
    %13 = arith.addf %8, %12 : vector<32x128xf32>
    %c192 = arith.constant 192 : index
    %c0_12 = arith.constant 0 : index
    %14 = vector.load %arg2[%c192, %c0_12] : memref<640x128xf32, #tpu.memory_space<vmem>>, vector<1x128xf32>
    %15 = vector.broadcast %14 : vector<1x128xf32> to vector<32x128xf32>
    %16 = arith.addf %13, %15 : vector<32x128xf32>
    %cst_13 = arith.constant 0.000000e+00 : f32
    %17 = vector.broadcast %cst_13 : f32 to vector<32x128xf32>
    %18 = arith.maximumf %16, %17 : vector<32x128xf32>
    %c8_i32 = arith.constant 8 : i32
    %19 = tpu.dynamic_rotate %18 by %c8_i32 dim 1 : vector<32x128xf32>, i32 -> vector<32x128xf32>
    %20 = arith.addf %18, %19 : vector<32x128xf32>
    %c16_i32 = arith.constant 16 : i32
    %21 = tpu.dynamic_rotate %20 by %c16_i32 dim 1 : vector<32x128xf32>, i32 -> vector<32x128xf32>
    %22 = arith.addf %20, %21 : vector<32x128xf32>
    %c32_i32 = arith.constant 32 : i32
    %23 = tpu.dynamic_rotate %22 by %c32_i32 dim 1 : vector<32x128xf32>, i32 -> vector<32x128xf32>
    %24 = arith.addf %22, %23 : vector<32x128xf32>
    %c64_i32 = arith.constant 64 : i32
    %25 = tpu.dynamic_rotate %24 by %c64_i32 dim 1 : vector<32x128xf32>, i32 -> vector<32x128xf32>
    %26 = arith.addf %24, %25 : vector<32x128xf32>
    %27 = vector.extract_strided_slice %26 {offsets = [0, 0], sizes = [32, 8], strides = [1, 1]} : vector<32x128xf32> to vector<32x8xf32>
    %c560 = arith.constant 560 : index
    %c0_14 = arith.constant 0 : index
    %28 = vector.load %arg2[%c560, %c0_14] : memref<640x128xf32, #tpu.memory_space<vmem>>, vector<2x32xf32>
    %cst_15 = arith.constant dense<0.000000e+00> : vector<2x8xf32>
    %29 = tpu.matmul %28, %27, %cst_15 {dimension_numbers = #tpu.dot_dimension_numbers<[1], [0], [0], [1], [0, 0, 1, 1], [], []>} : vector<2x32xf32>, vector<32x8xf32>, vector<2x8xf32> -> vector<2x8xf32>
    %c608 = arith.constant 608 : index
    %c0_16 = arith.constant 0 : index
    %30 = vector.load %arg2[%c608, %c0_16] : memref<640x128xf32, #tpu.memory_space<vmem>>, vector<8x4xf32>
    %cst_17 = arith.constant dense<0.000000e+00> : vector<2x4xf32>
    %31 = tpu.matmul %29, %30, %cst_17 {dimension_numbers = #tpu.dot_dimension_numbers<[1], [0], [0], [1], [0, 0, 1, 1], [], []>} : vector<2x8xf32>, vector<8x4xf32>, vector<2x4xf32> -> vector<2x4xf32>
    %c616 = arith.constant 616 : index
    %c0_18 = arith.constant 0 : index
    %32 = vector.load %arg2[%c616, %c0_18] : memref<640x128xf32, #tpu.memory_space<vmem>>, vector<1x4xf32>
    %33 = vector.broadcast %32 : vector<1x4xf32> to vector<2x4xf32>
    %34 = arith.addf %31, %33 : vector<2x4xf32>
    %cst_19 = arith.constant 0.000000e+00 : f32
    %35 = vector.broadcast %cst_19 : f32 to vector<2x4xf32>
    %36 = arith.maximumf %34, %35 : vector<2x4xf32>
    %c624 = arith.constant 624 : index
    %c0_20 = arith.constant 0 : index
    %37 = vector.load %arg2[%c624, %c0_20] : memref<640x128xf32, #tpu.memory_space<vmem>>, vector<4x8xf32>
    %cst_21 = arith.constant dense<0.000000e+00> : vector<2x8xf32>
    %38 = tpu.matmul %36, %37, %cst_21 {dimension_numbers = #tpu.dot_dimension_numbers<[1], [0], [0], [1], [0, 0, 1, 1], [], []>} : vector<2x4xf32>, vector<4x8xf32>, vector<2x8xf32> -> vector<2x8xf32>
    %c632 = arith.constant 632 : index
    %c0_22 = arith.constant 0 : index
    %39 = vector.load %arg2[%c632, %c0_22] : memref<640x128xf32, #tpu.memory_space<vmem>>, vector<1x8xf32>
    %40 = vector.broadcast %39 : vector<1x8xf32> to vector<2x8xf32>
    %41 = arith.addf %38, %40 : vector<2x8xf32>
    %42 = arith.negf %41 : vector<2x8xf32>
    %43 = math.exp %42 : vector<2x8xf32>
    %cst_23 = arith.constant 1.000000e+00 : f32
    %44 = vector.broadcast %cst_23 : f32 to vector<2x8xf32>
    %45 = arith.addf %44, %43 : vector<2x8xf32>
    %46 = arith.divf %44, %45 : vector<2x8xf32>
    %c568 = arith.constant 568 : index
    %c0_24 = arith.constant 0 : index
    %47 = vector.load %arg2[%c568, %c0_24] : memref<640x128xf32, #tpu.memory_space<vmem>>, vector<32x2xf32>
    %cst_25 = arith.constant dense<0.000000e+00> : vector<32x8xf32>
    %48 = tpu.matmul %47, %46, %cst_25 {dimension_numbers = #tpu.dot_dimension_numbers<[1], [0], [0], [1], [0, 0, 1, 1], [], []>} : vector<32x2xf32>, vector<2x8xf32>, vector<32x8xf32> -> vector<32x8xf32>
    %c600 = arith.constant 600 : index
    %c0_26 = arith.constant 0 : index
    %49 = vector.load %arg2[%c600, %c0_26] : memref<640x128xf32, #tpu.memory_space<vmem>>, vector<8x128xf32>
    %cst_27 = arith.constant dense<0.000000e+00> : vector<32x128xf32>
    %50 = tpu.matmul %48, %49, %cst_27 {dimension_numbers = #tpu.dot_dimension_numbers<[1], [0], [0], [1], [0, 0, 1, 1], [], []>} : vector<32x8xf32>, vector<8x128xf32>, vector<32x128xf32> -> vector<32x128xf32>
    %51 = arith.mulf %18, %50 : vector<32x128xf32>
    %c432 = arith.constant 432 : index
    %c0_28 = arith.constant 0 : index
    %52 = vector.load %arg2[%c432, %c0_28] : memref<640x128xf32, #tpu.memory_space<vmem>>, vector<128x128xf32>
    %cst_29 = arith.constant dense<0.000000e+00> : vector<32x128xf32>
    %53 = tpu.matmul %51, %52, %cst_29 {dimension_numbers = #tpu.dot_dimension_numbers<[1], [0], [0], [1], [0, 0, 1, 1], [], []>} : vector<32x128xf32>, vector<128x128xf32>, vector<32x128xf32> -> vector<32x128xf32>
    %c16_i32_30 = arith.constant 16 : i32
    %54 = tpu.dynamic_rotate %53 by %c16_i32_30 dim 1 : vector<32x128xf32>, i32 -> vector<32x128xf32>
    %55 = arith.addf %53, %54 : vector<32x128xf32>
    %56 = arith.maximumf %53, %54 : vector<32x128xf32>
    %c32_i32_31 = arith.constant 32 : i32
    %57 = tpu.dynamic_rotate %55 by %c32_i32_31 dim 1 : vector<32x128xf32>, i32 -> vector<32x128xf32>
    %58 = arith.addf %55, %57 : vector<32x128xf32>
    %c32_i32_32 = arith.constant 32 : i32
    %59 = tpu.dynamic_rotate %56 by %c32_i32_32 dim 1 : vector<32x128xf32>, i32 -> vector<32x128xf32>
    %60 = arith.maximumf %56, %59 : vector<32x128xf32>
    %c64_i32_33 = arith.constant 64 : i32
    %61 = tpu.dynamic_rotate %58 by %c64_i32_33 dim 1 : vector<32x128xf32>, i32 -> vector<32x128xf32>
    %62 = arith.addf %58, %61 : vector<32x128xf32>
    %c64_i32_34 = arith.constant 64 : i32
    %63 = tpu.dynamic_rotate %60 by %c64_i32_34 dim 1 : vector<32x128xf32>, i32 -> vector<32x128xf32>
    %64 = arith.maximumf %60, %63 : vector<32x128xf32>
    %cst_35 = arith.constant 0.000000e+00 : f32
    %65 = vector.broadcast %cst_35 : f32 to vector<2x32x32xf32>
    %c0_36 = arith.constant 0 : index
    %c0_37 = arith.constant 0 : index
    %c0_38 = arith.constant 0 : index
    %66 = vector.load %arg4[%c0_36, %c0_37, %c0_38] : memref<2x32x32xf32, #tpu.memory_space<vmem>>, vector<2x32x32xf32>
    tpu.vector_store %arg4[%c0_36, %c0_37, %c0_38], %65 {strides = array<i32>} : memref<2x32x32xf32, #tpu.memory_space<vmem>>, vector<2x32x32xf32>,
    %67 = vector.extract_strided_slice %62 {offsets = [0, 0], sizes = [32, 16], strides = [1, 1]} : vector<32x128xf32> to vector<32x16xf32>
    %68 = vector.shape_cast %67 : vector<32x16xf32> to vector<2x16x16xf32>
    %c0_39 = arith.constant 0 : index
    %c8 = arith.constant 8 : index
    %c0_40 = arith.constant 0 : index
    %69 = vector.load %arg4[%c0_39, %c8, %c0_40] : memref<2x32x32xf32, #tpu.memory_space<vmem>>, vector<2x16x16xf32>
    tpu.vector_store %arg4[%c0_39, %c8, %c0_40], %68 {strides = array<i32>} : memref<2x32x32xf32, #tpu.memory_space<vmem>>, vector<2x16x16xf32>,
    %70 = vector.extract_strided_slice %64 {offsets = [0, 0], sizes = [32, 16], strides = [1, 1]} : vector<32x128xf32> to vector<32x16xf32>
    %71 = vector.shape_cast %70 : vector<32x16xf32> to vector<2x16x16xf32>
    %c0_41 = arith.constant 0 : index
    %c8_42 = arith.constant 8 : index
    %c16 = arith.constant 16 : index
    %72 = vector.load %arg4[%c0_41, %c8_42, %c16] : memref<2x32x32xf32, #tpu.memory_space<vmem>>, vector<2x16x16xf32>
    tpu.vector_store %arg4[%c0_41, %c8_42, %c16], %71 {strides = array<i32>} : memref<2x32x32xf32, #tpu.memory_space<vmem>>, vector<2x16x16xf32>,
    %c0_43 = arith.constant 0 : index
    %c5 = arith.constant 5 : index
    %c0_44 = arith.constant 0 : index
    %73 = vector.load %arg4[%c0_43, %c5, %c0_44] : memref<2x32x32xf32, #tpu.memory_space<vmem>>, vector<2x16x32xf32>
    %74 = vector.shape_cast %73 : vector<2x16x32xf32> to vector<32x32xf32>
    %c200 = arith.constant 200 : index
    %c0_45 = arith.constant 0 : index
    %75 = vector.load %arg2[%c200, %c0_45] : memref<640x128xf32, #tpu.memory_space<vmem>>, vector<32x128xf32>
    %cst_46 = arith.constant dense<0.000000e+00> : vector<32x128xf32>
    %76 = tpu.matmul %74, %75, %cst_46 {dimension_numbers = #tpu.dot_dimension_numbers<[1], [0], [0], [1], [0, 0, 1, 1], [], []>} : vector<32x32xf32>, vector<32x128xf32>, vector<32x128xf32> -> vector<32x128xf32>
    %c0_47 = arith.constant 0 : index
    %c6 = arith.constant 6 : index
    %c0_48 = arith.constant 0 : index
    %77 = vector.load %arg4[%c0_47, %c6, %c0_48] : memref<2x32x32xf32, #tpu.memory_space<vmem>>, vector<2x16x32xf32>
    %78 = vector.shape_cast %77 : vector<2x16x32xf32> to vector<32x32xf32>
    %c232 = arith.constant 232 : index
    %c0_49 = arith.constant 0 : index
    %79 = vector.load %arg2[%c232, %c0_49] : memref<640x128xf32, #tpu.memory_space<vmem>>, vector<32x128xf32>
    %cst_50 = arith.constant dense<0.000000e+00> : vector<32x128xf32>
    %80 = tpu.matmul %78, %79, %cst_50 {dimension_numbers = #tpu.dot_dimension_numbers<[1], [0], [0], [1], [0, 0, 1, 1], [], []>} : vector<32x32xf32>, vector<32x128xf32>, vector<32x128xf32> -> vector<32x128xf32>
    %81 = arith.addf %76, %80 : vector<32x128xf32>
    %c0_51 = arith.constant 0 : index
    %c7 = arith.constant 7 : index
    %c0_52 = arith.constant 0 : index
    %82 = vector.load %arg4[%c0_51, %c7, %c0_52] : memref<2x32x32xf32, #tpu.memory_space<vmem>>, vector<2x16x32xf32>
    %83 = vector.shape_cast %82 : vector<2x16x32xf32> to vector<32x32xf32>
    %c264 = arith.constant 264 : index
    %c0_53 = arith.constant 0 : index
    %84 = vector.load %arg2[%c264, %c0_53] : memref<640x128xf32, #tpu.memory_space<vmem>>, vector<32x128xf32>
    %cst_54 = arith.constant dense<0.000000e+00> : vector<32x128xf32>
    %85 = tpu.matmul %83, %84, %cst_54 {dimension_numbers = #tpu.dot_dimension_numbers<[1], [0], [0], [1], [0, 0, 1, 1], [], []>} : vector<32x32xf32>, vector<32x128xf32>, vector<32x128xf32> -> vector<32x128xf32>
    %86 = arith.addf %81, %85 : vector<32x128xf32>
    %c0_55 = arith.constant 0 : index
    %c8_56 = arith.constant 8 : index
    %c0_57 = arith.constant 0 : index
    %87 = vector.load %arg4[%c0_55, %c8_56, %c0_57] : memref<2x32x32xf32, #tpu.memory_space<vmem>>, vector<2x16x32xf32>
    %88 = vector.shape_cast %87 : vector<2x16x32xf32> to vector<32x32xf32>
    %c296 = arith.constant 296 : index
    %c0_58 = arith.constant 0 : index
    %89 = vector.load %arg2[%c296, %c0_58] : memref<640x128xf32, #tpu.memory_space<vmem>>, vector<32x128xf32>
    %cst_59 = arith.constant dense<0.000000e+00> : vector<32x128xf32>
    %90 = tpu.matmul %88, %89, %cst_59 {dimension_numbers = #tpu.dot_dimension_numbers<[1], [0], [0], [1], [0, 0, 1, 1], [], []>} : vector<32x32xf32>, vector<32x128xf32>, vector<32x128xf32> -> vector<32x128xf32>
    %91 = arith.addf %86, %90 : vector<32x128xf32>
    %c0_60 = arith.constant 0 : index
    %c9 = arith.constant 9 : index
    %c0_61 = arith.constant 0 : index
    %92 = vector.load %arg4[%c0_60, %c9, %c0_61] : memref<2x32x32xf32, #tpu.memory_space<vmem>>, vector<2x16x32xf32>
    %93 = vector.shape_cast %92 : vector<2x16x32xf32> to vector<32x32xf32>
    %c328 = arith.constant 328 : index
    %c0_62 = arith.constant 0 : index
    %94 = vector.load %arg2[%c328, %c0_62] : memref<640x128xf32, #tpu.memory_space<vmem>>, vector<32x128xf32>
    %cst_63 = arith.constant dense<0.000000e+00> : vector<32x128xf32>
    %95 = tpu.matmul %93, %94, %cst_63 {dimension_numbers = #tpu.dot_dimension_numbers<[1], [0], [0], [1], [0, 0, 1, 1], [], []>} : vector<32x32xf32>, vector<32x128xf32>, vector<32x128xf32> -> vector<32x128xf32>
    %96 = arith.addf %91, %95 : vector<32x128xf32>
    %c0_64 = arith.constant 0 : index
    %c10 = arith.constant 10 : index
    %c0_65 = arith.constant 0 : index
    %97 = vector.load %arg4[%c0_64, %c10, %c0_65] : memref<2x32x32xf32, #tpu.memory_space<vmem>>, vector<2x16x32xf32>
    %98 = vector.shape_cast %97 : vector<2x16x32xf32> to vector<32x32xf32>
    %c360 = arith.constant 360 : index
    %c0_66 = arith.constant 0 : index
    %99 = vector.load %arg2[%c360, %c0_66] : memref<640x128xf32, #tpu.memory_space<vmem>>, vector<32x128xf32>
    %cst_67 = arith.constant dense<0.000000e+00> : vector<32x128xf32>
    %100 = tpu.matmul %98, %99, %cst_67 {dimension_numbers = #tpu.dot_dimension_numbers<[1], [0], [0], [1], [0, 0, 1, 1], [], []>} : vector<32x32xf32>, vector<32x128xf32>, vector<32x128xf32> -> vector<32x128xf32>
    %101 = arith.addf %96, %100 : vector<32x128xf32>
    %c0_68 = arith.constant 0 : index
    %c11 = arith.constant 11 : index
    %c0_69 = arith.constant 0 : index
    %102 = vector.load %arg4[%c0_68, %c11, %c0_69] : memref<2x32x32xf32, #tpu.memory_space<vmem>>, vector<2x16x32xf32>
    %103 = vector.shape_cast %102 : vector<2x16x32xf32> to vector<32x32xf32>
    %c392 = arith.constant 392 : index
    %c0_70 = arith.constant 0 : index
    %104 = vector.load %arg2[%c392, %c0_70] : memref<640x128xf32, #tpu.memory_space<vmem>>, vector<32x128xf32>
    %cst_71 = arith.constant dense<0.000000e+00> : vector<32x128xf32>
    %105 = tpu.matmul %103, %104, %cst_71 {dimension_numbers = #tpu.dot_dimension_numbers<[1], [0], [0], [1], [0, 0, 1, 1], [], []>} : vector<32x32xf32>, vector<32x128xf32>, vector<32x128xf32> -> vector<32x128xf32>
    %106 = arith.addf %101, %105 : vector<32x128xf32>
    %c424 = arith.constant 424 : index
    %c0_72 = arith.constant 0 : index
    %107 = vector.load %arg2[%c424, %c0_72] : memref<640x128xf32, #tpu.memory_space<vmem>>, vector<1x128xf32>
    %108 = vector.broadcast %107 : vector<1x128xf32> to vector<32x128xf32>
    %109 = arith.addf %106, %108 : vector<32x128xf32>
    %110 = arith.negf %109 : vector<32x128xf32>
    %111 = math.exp %110 : vector<32x128xf32>
    %cst_73 = arith.constant 1.000000e+00 : f32
    %112 = vector.broadcast %cst_73 : f32 to vector<32x128xf32>
    %113 = arith.addf %112, %111 : vector<32x128xf32>
    %114 = arith.divf %112, %113 : vector<32x128xf32>
    %115 = arith.mulf %51, %114 : vector<32x128xf32>
    %c0_74 = arith.constant 0 : index
    %c0_75 = arith.constant 0 : index
    %116 = vector.load %arg3[%c0_74, %c0_75] : memref<32x128xf32, #tpu.memory_space<vmem>>, vector<32x128xf32>
    tpu.vector_store %arg3[%c0_74, %c0_75], %115 {strides = array<i32>} : memref<32x128xf32, #tpu.memory_space<vmem>>, vector<32x128xf32>,
    return
  }
  func.func @transform_0(%arg0: i32) -> (i32, i32, i32) {
    %c0_i32 = arith.constant 0 : i32
    %c0_i32_0 = arith.constant 0 : i32
    %c0_i32_1 = arith.constant 0 : i32
    %c0_i32_2 = arith.constant 0 : i32
    return %c0_i32, %c0_i32_0, %c0_i32_1 : i32, i32, i32
  }
  func.func @transform_1(%arg0: i32) -> (i32, i32) {
    %c0_i32 = arith.constant 0 : i32
    %c0_i32_0 = arith.constant 0 : i32
    %c0_i32_1 = arith.constant 0 : i32
    return %c0_i32, %c0_i32_0 : i32, i32
  }
  func.func @transform_2(%arg0: i32) -> (i32, i32) {
    %c0_i32 = arith.constant 0 : i32
    %c0_i32_0 = arith.constant 0 : i32
    %c0_i32_1 = arith.constant 0 : i32
    return %c0_i32, %c0_i32_0 : i32, i32
  }
}

</mosaic_0001>

<llo_original>
// kernel: feature_extractor_forward.1
$region0: #{feature_extractor_forward.1}
  #allocation0 [shape = 'u32[]', space=smem, size = 0x4, offset = 0x4, fixed_abs, tag = 'smem constant byte address 0x4 - core index']
  #allocation1 [shape = 'u32[144,128]{1,0:T(1,128)}', space=vmem, size = 0x12000, scoped, tag = 'internal scratch']
  #allocation2 [shape = 'f32[2,32,32]{2,1,0:T(8,128)}', space=vmem, size = 0x8000, scoped, tag = 'scratch operand']
  %s0 = inlined_call_operand.vmem [shape: f32[2,18,64], index: 0, kind: input, shape index: {}]
  %s1 = inlined_call_operand.hbm [shape: f32[640,128], index: 1, kind: input, shape index: {}]
  %s2 = inlined_call_operand.vmem [shape: f32[32,128], index: 2, kind: output, shape index: {}]
  %s3 = sld [smem:[#allocation0]]
  $region22: #{feature_extractor_forward.1} parent=0
    _
  %s5 = ssub.s32 1, %s3
  %s6 = scalar_select 0, %s5, %s3
  $region1: #{feature_extractor_forward.1} parent=0
    #allocation3 [shape = 'u8[327680]{0}', space=vmem, size = 0x50000, scoped, tag = 'input window, operand 1, single buffered']
    #allocation4 [shape = 's32[1]{0}', space=sflag, size = 0x4, scoped, tag = 'scoped memory for feature_extractor_forward.1']
    %7 = vsyncpa [#allocation4], 0
    // Predicated region
    $region2: #{feature_extractor_forward.1} parent=1 // pred_check
      _
    $region3: #{feature_extractor_forward.1} parent=1 // pred_check_branch
      %9 = sbr.rel (0) target = $region5
    $region4: #{feature_extractor_forward.1} parent=1 // pred_region
      _
    $region5: #{feature_extractor_forward.1} parent=1 // pred_fallthru
      _
    // Predicated region
    $region6: #{feature_extractor_forward.1} parent=1 // pred_check
      _
    $region7: #{feature_extractor_forward.1} parent=1 // pred_check_branch
      %11 = sbr.rel (0) target = $region9
    $region8: #{feature_extractor_forward.1} parent=1 // pred_region
      %s13 = ssub.s32 10240, 10240
      %14 = vsyncadd [#allocation4], %s13
      %s15 = sshll.u32 [#allocation3], 4
      %s16 = int_to_ptr.vmem [resolvable:$true] %s15
      %21 = dma.hbm_to_vmem [thread:$0]  %s1, 10240, %s16, [#allocation4], 128, 128, 8
    $region9: #{feature_extractor_forward.1} parent=1 // pred_fallthru
      _
    // Predicated region
    $region10: #{feature_extractor_forward.1} parent=1 // pred_check
      _
    $region11: #{feature_extractor_forward.1} parent=1 // pred_check_branch
      %23 = sbr.rel (0) target = $region13
    $region12: #{feature_extractor_forward.1} parent=1 // pred_region
      %24 = dma.done [#allocation4], 10240
    $region13: #{feature_extractor_forward.1} parent=1 // pred_fallthru
      _
    %v25 = vld [vmem:[%s0] sm:$0xff]
    %v26 = vld [vmem:[%s0 + $0x8] sm:$0xff]
    %v27 = vld [vmem:[%s0 + $0x18] sm:$0xff]
    %v28 = vld [vmem:[%s0 + $0x20] sm:$0xff]
    %v29 = vld [vmem:[#allocation3] sm:$0xff]
    %v30 = vld [vmem:[#allocation3 + $0x8] sm:$0xff]
    %v31 = vld [vmem:[#allocation3 + $0x10] sm:$0xff]
    %v32 = vld [vmem:[#allocation3 + $0x18] sm:$0xff]
    %v33 = vld [vmem:[#allocation3 + $0x20] sm:$0xff]
    %v34 = vld [vmem:[#allocation3 + $0x28] sm:$0xff]
    %v35 = vld [vmem:[#allocation3 + $0x30] sm:$0xff]
    %v36 = vld [vmem:[#allocation3 + $0x38] sm:$0xff]
    %v37 = vld [vmem:[%s0 + $0x1] sm:$0xff]
    %v38 = vld [vmem:[%s0 + $0x9] sm:$0xff]
    %v39 = vld [vmem:[%s0 + $0x19] sm:$0xff]
    %v40 = vld [vmem:[%s0 + $0x21] sm:$0xff]
    %v41 = vld [vmem:[#allocation3 + $0x40] sm:$0xff]
    %v42 = vld [vmem:[#allocation3 + $0x48] sm:$0xff]
    %v43 = vld [vmem:[#allocation3 + $0x50] sm:$0xff]
    %v44 = vld [vmem:[#allocation3 + $0x58] sm:$0xff]
    %v45 = vld [vmem:[#allocation3 + $0x60] sm:$0xff]
    %v46 = vld [vmem:[#allocation3 + $0x68] sm:$0xff]
    %v47 = vld [vmem:[#allocation3 + $0x70] sm:$0xff]
    %v48 = vld [vmem:[#allocation3 + $0x78] sm:$0xff]
    %vm49 = vcmask 523264
    %v51 = vsel %vm49, %v37, 0
    %v54 = vsel %vm49, %v38, 0
    %v57 = vsel %vm49, %v39, 0
    %v60 = vsel %vm49, %v40, 0
    %62 = vmatprep.subr.mxu0 0.0
    %63 = vmatpush1.msra.mxu0 %v41
    %64 = vmatprep.subr.mxu0 0.0
    %65 = vmatpush1.msra.mxu0 %v42
    %66 = vmatprep.subr.mxu0 0.0
    %67 = vmatpush1.msra.mxu0 %v43
    %68 = vmatprep.subr.mxu0 0.0
    %69 = vmatpush1.msra.mxu0 %v44
    %70 = vmatprep.subr.mxu0 0.0
    %71 = vmatpush1.msra.mxu0 %v45
    %72 = vmatprep.subr.mxu0 0.0
    %73 = vmatpush1.msra.mxu0 %v46
    %74 = vmatprep.subr.mxu0 0.0
    %75 = vmatpush1.msra.mxu0 %v47
    %76 = vmatprep.subr.mxu0 0.0
    %77 = vmatpush1.msra.mxu0 %v48
    %78 = vmatprep.subr.mxu0 0.0
    %79 = vmatpush1.msra.mxu0 0.0
    %80 = vmatprep.subr.mxu0 0.0
    %81 = vmatpush1.msra.mxu0 0.0
    %82 = vmatprep.subr.mxu0 0.0
    %83 = vmatpush1.msra.mxu0 0.0
    %84 = vmatprep.subr.mxu0 0.0
    %85 = vmatpush1.msra.mxu0 0.0
    %86 = vmatprep.subr.mxu0 0.0
    %87 = vmatpush1.msra.mxu0 0.0
    %88 = vmatprep.subr.mxu0 0.0
    %89 = vmatpush1.msra.mxu0 0.0
    %90 = vmatprep.subr.mxu0 0.0
    %91 = vmatpush1.msra.mxu0 0.0
    %92 = vmatprep.subr.mxu0 0.0
    %93 = vmatpush1.msra.mxu0 0.0
    %94 = vmatprep.subr.mxu0 0.0
    %95 = vmatpush1.msra.mxu0 0.0
    %96 = vmatprep.subr.mxu0 0.0
    %97 = vmatpush1.msra.mxu0 0.0
    %98 = vmatprep.subr.mxu0 0.0
    %99 = vmatpush1.msra.mxu0 0.0
    %100 = vmatprep.subr.mxu0 0.0
    %101 = vmatpush1.msra.mxu0 0.0
    %102 = vmatprep.subr.mxu0 0.0
    %103 = vmatpush1.msra.mxu0 0.0
    %104 = vmatprep.subr.mxu0 0.0
    %105 = vmatpush1.msra.mxu0 0.0
    %106 = vmatprep.subr.mxu0 0.0
    %107 = vmatpush1.msra.mxu0 0.0
    %108 = vmatprep.subr.mxu0 0.0
    %109 = vmatpush1.msra.mxu0 0.0
    %110 = vmatprep.subr.mxu0 0.0
    %111 = vmatpush1.msra.mxu0 0.0
    %112 = vmatprep.subr.mxu0 0.0
    %113 = vmatpush1.msra.mxu0 0.0
    %114 = vmatprep.subr.mxu0 0.0
    %115 = vmatpush1.msra.mxu0 0.0
    %116 = vmatprep.subr.mxu0 0.0
    %117 = vmatpush1.msra.mxu0 0.0
    %118 = vmatprep.subr.mxu0 0.0
    %119 = vmatpush1.msra.mxu0 0.0
    %120 = vmatprep.subr.mxu0 0.0
    %121 = vmatpush1.msra.mxu0 0.0
    %122 = vmatprep.subr.mxu0 0.0
    %123 = vmatpush1.msra.mxu0 0.0
    %124 = vmatprep.subr.mxu0 0.0
    %125 = vmatpush1.msra.mxu0 0.0
    %126 = vmatprep.mubr.f32.mxu0 0.0
    %127 = vmatmul.mubr.f32.gmra.mrb[0].mxu0 %v51
    %v128 = vpop.f32.mrb[0].mxu0
    %v129 = vadd.f32 0.0, %v128
    %v130 = vpop.f32.mrb[0].mxu0
    %131 = vmatprep.mubr.f32.mxu0 0.0
    %132 = vmatmul.mubr.f32.gmra.mrb[0].mxu0 %v54
    %v133 = vpop.f32.mrb[0].mxu0
    %v134 = vadd.f32 0.0, %v133
    %v135 = vpop.f32.mrb[0].mxu0
    %136 = vmatprep.mubr.f32.mxu0 0.0
    %137 = vmatmul.mubr.f32.gmra.mrb[0].mxu0 %v57
    %v138 = vpop.f32.mrb[0].mxu0
    %v139 = vadd.f32 0.0, %v138
    %v140 = vpop.f32.mrb[0].mxu0
    %141 = vmatprep.mubr.f32.mxu0 0.0
    %142 = vmatmul.mubr.f32.gmra.mrb[0].mxu0 %v60
    %v143 = vpop.f32.mrb[0].mxu0
    %v144 = vadd.f32 0.0, %v143
    %v145 = vpop.f32.mrb[0].mxu0
    %146 = vdwg.mxu0
    %v148 = vsel %vm49, %v25, 0
    %v151 = vsel %vm49, %v26, 0
    %v154 = vsel %vm49, %v27, 0
    %v157 = vsel %vm49, %v28, 0
    %159 = vmatprep.subr.mxu0 0.0
    %160 = vmatpush1.msra.mxu0 %v29
    %161 = vmatprep.subr.mxu0 0.0
    %162 = vmatpush1.msra.mxu0 %v30
    %163 = vmatprep.subr.mxu0 0.0
    %164 = vmatpush1.msra.mxu0 %v31
    %165 = vmatprep.subr.mxu0 0.0
    %166 = vmatpush1.msra.mxu0 %v32
    %167 = vmatprep.subr.mxu0 0.0
    %168 = vmatpush1.msra.mxu0 %v33
    %169 = vmatprep.subr.mxu0 0.0
    %170 = vmatpush1.msra.mxu0 %v34
    %171 = vmatprep.subr.mxu0 0.0
    %172 = vmatpush1.msra.mxu0 %v35
    %173 = vmatprep.subr.mxu0 0.0
    %174 = vmatpush1.msra.mxu0 %v36
    %175 = vmatprep.subr.mxu0 0.0
    %176 = vmatpush1.msra.mxu0 0.0
    %177 = vmatprep.subr.mxu0 0.0
    %178 = vmatpush1.msra.mxu0 0.0
    %179 = vmatprep.subr.mxu0 0.0
    %180 = vmatpush1.msra.mxu0 0.0
    %181 = vmatprep.subr.mxu0 0.0
    %182 = vmatpush1.msra.mxu0 0.0
    %183 = vmatprep.subr.mxu0 0.0
    %184 = vmatpush1.msra.mxu0 0.0
    %185 = vmatprep.subr.mxu0 0.0
    %186 = vmatpush1.msra.mxu0 0.0
    %187 = vmatprep.subr.mxu0 0.0
    %188 = vmatpush1.msra.mxu0 0.0
    %189 = vmatprep.subr.mxu0 0.0
    %190 = vmatpush1.msra.mxu0 0.0
    %191 = vmatprep.subr.mxu0 0.0
    %192 = vmatpush1.msra.mxu0 0.0
    %193 = vmatprep.subr.mxu0 0.0
    %194 = vmatpush1.msra.mxu0 0.0
    %195 = vmatprep.subr.mxu0 0.0
    %196 = vmatpush1.msra.mxu0 0.0
    %197 = vmatprep.subr.mxu0 0.0
    %198 = vmatpush1.msra.mxu0 0.0
    %199 = vmatprep.subr.mxu0 0.0
    %200 = vmatpush1.msra.mxu0 0.0
    %201 = vmatprep.subr.mxu0 0.0
    %202 = vmatpush1.msra.mxu0 0.0
    %203 = vmatprep.subr.mxu0 0.0
    %204 = vmatpush1.msra.mxu0 0.0
    %205 = vmatprep.subr.mxu0 0.0
    %206 = vmatpush1.msra.mxu0 0.0
    %207 = vmatprep.subr.mxu0 0.0
    %208 = vmatpush1.msra.mxu0 0.0
    %209 = vmatprep.subr.mxu0 0.0
    %210 = vmatpush1.msra.mxu0 0.0
    %211 = vmatprep.subr.mxu0 0.0
    %212 = vmatpush1.msra.mxu0 0.0
    %213 = vmatprep.subr.mxu0 0.0
    %214 = vmatpush1.msra.mxu0 0.0
    %215 = vmatprep.subr.mxu0 0.0
    %216 = vmatpush1.msra.mxu0 0.0
    %217 = vmatprep.subr.mxu0 0.0
    %218 = vmatpush1.msra.mxu0 0.0
    %219 = vmatprep.subr.mxu0 0.0
    %220 = vmatpush1.msra.mxu0 0.0
    %221 = vmatprep.subr.mxu0 0.0
    %222 = vmatpush1.msra.mxu0 0.0
    %223 = vmatprep.mubr.f32.mxu0 0.0
    %224 = vmatmul.mubr.f32.gmra.mrb[0].mxu0 %v148
    %v225 = vpop.f32.mrb[0].mxu0
    %v226 = vadd.f32 %v129, %v225
    %v227 = vpop.f32.mrb[0].mxu0
    %228 = vmatprep.mubr.f32.mxu0 0.0
    %229 = vmatmul.mubr.f32.gmra.mrb[0].mxu0 %v151
    %v230 = vpop.f32.mrb[0].mxu0
    %v231 = vadd.f32 %v134, %v230
    %v232 = vpop.f32.mrb[0].mxu0
    %233 = vmatprep.mubr.f32.mxu0 0.0
    %234 = vmatmul.mubr.f32.gmra.mrb[0].mxu0 %v154
    %v235 = vpop.f32.mrb[0].mxu0
    %v236 = vadd.f32 %v139, %v235
    %v237 = vpop.f32.mrb[0].mxu0
    %238 = vmatprep.mubr.f32.mxu0 0.0
    %239 = vmatmul.mubr.f32.gmra.mrb[0].mxu0 %v157
    %v240 = vpop.f32.mrb[0].mxu0
    %v241 = vadd.f32 %v144, %v240
    %v242 = vpop.f32.mrb[0].mxu0
    %243 = vdwg.mxu0
    %v244 = vld [vmem:[%s0 + $0x2] sm:$0xff]
    %v245 = vld [vmem:[%s0 + $0xa] sm:$0xff]
    %v246 = vld [vmem:[%s0 + $0x1a] sm:$0xff]
    %v247 = vld [vmem:[%s0 + $0x22] sm:$0xff]
    %v248 = vld [vmem:[#allocation3 + $0x80] sm:$0xff]
    %v249 = vld [vmem:[#allocation3 + $0x88] sm:$0xff]
    %v250 = vld [vmem:[#allocation3 + $0x90] sm:$0xff]
    %v251 = vld [vmem:[#allocation3 + $0x98] sm:$0xff]
    %v252 = vld [vmem:[#allocation3 + $0xa0] sm:$0xff]
    %v253 = vld [vmem:[#allocation3 + $0xa8] sm:$0xff]
    %v254 = vld [vmem:[#allocation3 + $0xb0] sm:$0xff]
    %v255 = vld [vmem:[#allocation3 + $0xb8] sm:$0xff]
    %v257 = vsel %vm49, %v244, 0
    %v260 = vsel %vm49, %v245, 0
    %v263 = vsel %vm49, %v246, 0
    %v266 = vsel %vm49, %v247, 0
    %268 = vmatprep.subr.mxu0 0.0
    %269 = vmatpush1.msra.mxu0 %v248
    %270 = vmatprep.subr.mxu0 0.0
    %271 = vmatpush1.msra.mxu0 %v249
    %272 = vmatprep.subr.mxu0 0.0
    %273 = vmatpush1.msra.mxu0 %v250
    %274 = vmatprep.subr.mxu0 0.0
    %275 = vmatpush1.msra.mxu0 %v251
    %276 = vmatprep.subr.mxu0 0.0
    %277 = vmatpush1.msra.mxu0 %v252
    %278 = vmatprep.subr.mxu0 0.0
    %279 = vmatpush1.msra.mxu0 %v253
    %280 = vmatprep.subr.mxu0 0.0
    %281 = vmatpush1.msra.mxu0 %v254
    %282 = vmatprep.subr.mxu0 0.0
    %283 = vmatpush1.msra.mxu0 %v255
    %284 = vmatprep.subr.mxu0 0.0
    %285 = vmatpush1.msra.mxu0 0.0
    %286 = vmatprep.subr.mxu0 0.0
    %287 = vmatpush1.msra.mxu0 0.0
    %288 = vmatprep.subr.mxu0 0.0
    %289 = vmatpush1.msra.mxu0 0.0
    %290 = vmatprep.subr.mxu0 0.0
    %291 = vmatpush1.msra.mxu0 0.0
    %292 = vmatprep.subr.mxu0 0.0
    %293 = vmatpush1.msra.mxu0 0.0
    %294 = vmatprep.subr.mxu0 0.0
    %295 = vmatpush1.msra.mxu0 0.0
    %296 = vmatprep.subr.mxu0 0.0
    %297 = vmatpush1.msra.mxu0 0.0
    %298 = vmatprep.subr.mxu0 0.0
    %299 = vmatpush1.msra.mxu0 0.0
    %300 = vmatprep.subr.mxu0 0.0
    %301 = vmatpush1.msra.mxu0 0.0
    %302 = vmatprep.subr.mxu0 0.0
    %303 = vmatpush1.msra.mxu0 0.0
    %304 = vmatprep.subr.mxu0 0.0
    %305 = vmatpush1.msra.mxu0 0.0
    %306 = vmatprep.subr.mxu0 0.0
    %307 = vmatpush1.msra.mxu0 0.0
    %308 = vmatprep.subr.mxu0 0.0
    %309 = vmatpush1.msra.mxu0 0.0
    %310 = vmatprep.subr.mxu0 0.0
    %311 = vmatpush1.msra.mxu0 0.0
    %312 = vmatprep.subr.mxu0 0.0
    %313 = vmatpush1.msra.mxu0 0.0
    %314 = vmatprep.subr.mxu0 0.0
    %315 = vmatpush1.msra.mxu0 0.0
    %316 = vmatprep.subr.mxu0 0.0
    %317 = vmatpush1.msra.mxu0 0.0
    %318 = vmatprep.subr.mxu0 0.0
    %319 = vmatpush1.msra.mxu0 0.0
    %320 = vmatprep.subr.mxu0 0.0
    %321 = vmatpush1.msra.mxu0 0.0
    %322 = vmatprep.subr.mxu0 0.0
    %323 = vmatpush1.msra.mxu0 0.0
    %324 = vmatprep.subr.mxu0 0.0
    %325 = vmatpush1.msra.mxu0 0.0
    %326 = vmatprep.subr.mxu0 0.0
    %327 = vmatpush1.msra.mxu0 0.0
    %328 = vmatprep.subr.mxu0 0.0
    %329 = vmatpush1.msra.mxu0 0.0
    %330 = vmatprep.subr.mxu0 0.0
    %331 = vmatpush1.msra.mxu0 0.0
    %332 = vmatprep.mubr.f32.mxu0 0.0
    %333 = vmatmul.mubr.f32.gmra.mrb[0].mxu0 %v257
    %v334 = vpop.f32.mrb[0].mxu0
    %v335 = vadd.f32 0.0, %v334
    %v336 = vpop.f32.mrb[0].mxu0
    %337 = vmatprep.mubr.f32.mxu0 0.0
    %338 = vmatmul.mubr.f32.gmra.mrb[0].mxu0 %v260
    %v339 = vpop.f32.mrb[0].mxu0
    %v340 = vadd.f32 0.0, %v339
    %v341 = vpop.f32.mrb[0].mxu0
    %342 = vmatprep.mubr.f32.mxu0 0.0
    %343 = vmatmul.mubr.f32.gmra.mrb[0].mxu0 %v263
    %v344 = vpop.f32.mrb[0].mxu0
    %v345 = vadd.f32 0.0, %v344
    %v346 = vpop.f32.mrb[0].mxu0
    %347 = vmatprep.mubr.f32.mxu0 0.0
    %348 = vmatmul.mubr.f32.gmra.mrb[0].mxu0 %v266
    %v349 = vpop.f32.mrb[0].mxu0
    %v350 = vadd.f32 0.0, %v349
    %v351 = vpop.f32.mrb[0].mxu0
    %352 = vdwg.mxu0
    %v353 = vadd.f32 %v226, %v335
    %v354 = vadd.f32 %v231, %v340
    %v355 = vadd.f32 %v236, %v345
    %v356 = vadd.f32 %v241, %v350
    %v357 = vld [vmem:[#allocation3 + $0xc0] sm:$0x1]
    %v358 = vlaneseq
    %v359 = vshrl.u32 %v358, 7
    %v360 = vsub.s32 0, %v359
    %v361 = vrot.slane %v357, %v360
    %v362 = vadd.f32 %v353, %v361
    %v363 = vadd.f32 %v354, %v361
    %v364 = vadd.f32 %v355, %v361
    %v365 = vadd.f32 %v356, %v361
    %v366 = vmax.f32 %v362, 0.0
    %v367 = vmax.f32 %v363, 0.0
    %v368 = vmax.f32 %v364, 0.0
    %v369 = vmax.f32 %v365, 0.0
    %370 = vrot.lane.b32.xlu0 %v366, 8
    %v371 = vpop.permute.xlu0 %370
    %372 = vrot.lane.b32.xlu0 %v367, 8
    %v373 = vpop.permute.xlu0 %372
    %374 = vrot.lane.b32.xlu0 %v368, 8
    %v375 = vpop.permute.xlu0 %374
    %376 = vrot.lane.b32.xlu0 %v369, 8
    %v377 = vpop.permute.xlu0 %376
    %v378 = vadd.f32 %v366, %v371
    %v379 = vadd.f32 %v367, %v373
    %v380 = vadd.f32 %v368, %v375
    %v381 = vadd.f32 %v369, %v377
    %382 = vrot.lane.b32.xlu0 %v378, 16
    %v383 = vpop.permute.xlu0 %382
    %384 = vrot.lane.b32.xlu0 %v379, 16
    %v385 = vpop.permute.xlu0 %384
    %386 = vrot.lane.b32.xlu0 %v380, 16
    %v387 = vpop.permute.xlu0 %386
    %388 = vrot.lane.b32.xlu0 %v381, 16
    %v389 = vpop.permute.xlu0 %388
    %v390 = vadd.f32 %v378, %v383
    %v391 = vadd.f32 %v379, %v385
    %v392 = vadd.f32 %v380, %v387
    %v393 = vadd.f32 %v381, %v389
    %394 = vrot.lane.b32.xlu0 %v390, 32
    %v395 = vpop.permute.xlu0 %394
    %396 = vrot.lane.b32.xlu0 %v391, 32
    %v397 = vpop.permute.xlu0 %396
    %398 = vrot.lane.b32.xlu0 %v392, 32
    %v399 = vpop.permute.xlu0 %398
    %400 = vrot.lane.b32.xlu0 %v393, 32
    %v401 = vpop.permute.xlu0 %400
    %v402 = vadd.f32 %v390, %v395
    %v403 = vadd.f32 %v391, %v397
    %v404 = vadd.f32 %v392, %v399
    %v405 = vadd.f32 %v393, %v401
    %406 = vrot.lane.b32.xlu0 %v402, 64
    %v407 = vpop.permute.xlu0 %406
    %408 = vrot.lane.b32.xlu0 %v403, 64
    %v409 = vpop.permute.xlu0 %408
    %410 = vrot.lane.b32.xlu0 %v404, 64
    %v411 = vpop.permute.xlu0 %410
    %412 = vrot.lane.b32.xlu0 %v405, 64
    %v413 = vpop.permute.xlu0 %412
    %v414 = vadd.f32 %v402, %v407
    %v415 = vadd.f32 %v403, %v409
    %v416 = vadd.f32 %v404, %v411
    %v417 = vadd.f32 %v405, %v413
    %v418 = vld [vmem:[#allocation3 + $0x230] sm:$0x3]
    %vm419 = vcmask 261120
    %v421 = vsel %vm419, %v418, 0
    %423 = vmatprep.subr.mxu0 0.0
    %424 = vmatpush1.msra.mxu0 %v414
    %425 = vmatprep.subr.mxu0 0.0
    %426 = vmatpush1.msra.mxu0 %v415
    %427 = vmatprep.subr.mxu0 0.0
    %428 = vmatpush1.msra.mxu0 %v416
    %429 = vmatprep.subr.mxu0 0.0
    %430 = vmatpush1.msra.mxu0 %v417
    %431 = vmatprep.subr.mxu0 0.0
    %432 = vmatpush1.msra.mxu0 0.0
    %433 = vmatprep.subr.mxu0 0.0
    %434 = vmatpush1.msra.mxu0 0.0
    %435 = vmatprep.subr.mxu0 0.0
    %436 = vmatpush1.msra.mxu0 0.0
    %437 = vmatprep.subr.mxu0 0.0
    %438 = vmatpush1.msra.mxu0 0.0
    %439 = vmatprep.subr.mxu0 0.0
    %440 = vmatpush1.msra.mxu0 0.0
    %441 = vmatprep.subr.mxu0 0.0
    %442 = vmatpush1.msra.mxu0 0.0
    %443 = vmatprep.subr.mxu0 0.0
    %444 = vmatpush1.msra.mxu0 0.0
    %445 = vmatprep.subr.mxu0 0.0
    %446 = vmatpush1.msra.mxu0 0.0
    %447 = vmatprep.subr.mxu0 0.0
    %448 = vmatpush1.msra.mxu0 0.0
    %449 = vmatprep.subr.mxu0 0.0
    %450 = vmatpush1.msra.mxu0 0.0
    %451 = vmatprep.subr.mxu0 0.0
    %452 = vmatpush1.msra.mxu0 0.0
    %453 = vmatprep.subr.mxu0 0.0
    %454 = vmatpush1.msra.mxu0 0.0
    %455 = vmatprep.subr.mxu0 0.0
    %456 = vmatpush1.msra.mxu0 0.0
    %457 = vmatprep.subr.mxu0 0.0
    %458 = vmatpush1.msra.mxu0 0.0
    %459 = vmatprep.subr.mxu0 0.0
    %460 = vmatpush1.msra.mxu0 0.0
    %461 = vmatprep.subr.mxu0 0.0
    %462 = vmatpush1.msra.mxu0 0.0
    %463 = vmatprep.subr.mxu0 0.0
    %464 = vmatpush1.msra.mxu0 0.0
    %465 = vmatprep.subr.mxu0 0.0
    %466 = vmatpush1.msra.mxu0 0.0
    %467 = vmatprep.subr.mxu0 0.0
    %468 = vmatpush1.msra.mxu0 0.0
    %469 = vmatprep.subr.mxu0 0.0
    %470 = vmatpush1.msra.mxu0 0.0
    %471 = vmatprep.subr.mxu0 0.0
    %472 = vmatpush1.msra.mxu0 0.0
    %473 = vmatprep.subr.mxu0 0.0
    %474 = vmatpush1.msra.mxu0 0.0
    %475 = vmatprep.subr.mxu0 0.0
    %476 = vmatpush1.msra.mxu0 0.0
    %477 = vmatprep.subr.mxu0 0.0
    %478 = vmatpush1.msra.mxu0 0.0
    %479 = vmatprep.subr.mxu0 0.0
    %480 = vmatpush1.msra.mxu0 0.0
    %481 = vmatprep.subr.mxu0 0.0
    %482 = vmatpush1.msra.mxu0 0.0
    %483 = vmatprep.subr.mxu0 0.0
    %484 = vmatpush1.msra.mxu0 0.0
    %485 = vmatprep.subr.mxu0 0.0
    %486 = vmatpush1.msra.mxu0 0.0
    %487 = vmatprep.mubr.f32.mxu0 0.0
    %488 = vmatmul.mubr.f32.gmra.mrb[0].mxu0 %v421
    %v489 = vpop.f32.mrb[0].mxu0
    %v490 = vadd.f32 0.0, %v489
    %v491 = vpop.f32.mrb[0].mxu0
    %492 = vdwg.mxu0
    %v493 = vld [vmem:[#allocation3 + $0x260] sm:$0xff]
    %v494 = vld [vmem:[#allocation3 + $0x268] sm:$0x1]
    %v495 = vlaneseq
    %v496 = vshrl.u32 %v495, 7
    %v497 = vsub.s32 0, %v496
    %v498 = vrot.slane %v494, %v497
    %vm499 = vcmask 64512
    %v501 = vsel %vm499, %v490, 0
    %503 = vmatprep.subr.mxu0 0.0
    %504 = vmatpush1.msra.mxu0 %v493
    %505 = vmatprep.subr.mxu0 0.0
    %506 = vmatpush1.msra.mxu0 0.0
    %507 = vmatprep.subr.mxu0 0.0
    %508 = vmatpush1.msra.mxu0 0.0
    %509 = vmatprep.subr.mxu0 0.0
    %510 = vmatpush1.msra.mxu0 0.0
    %511 = vmatprep.subr.mxu0 0.0
    %512 = vmatpush1.msra.mxu0 0.0
    %513 = vmatprep.subr.mxu0 0.0
    %514 = vmatpush1.msra.mxu0 0.0
    %515 = vmatprep.subr.mxu0 0.0
    %516 = vmatpush1.msra.mxu0 0.0
    %517 = vmatprep.subr.mxu0 0.0
    %518 = vmatpush1.msra.mxu0 0.0
    %519 = vmatprep.subr.mxu0 0.0
    %520 = vmatpush1.msra.mxu0 0.0
    %521 = vmatprep.subr.mxu0 0.0
    %522 = vmatpush1.msra.mxu0 0.0
    %523 = vmatprep.subr.mxu0 0.0
    %524 = vmatpush1.msra.mxu0 0.0
    %525 = vmatprep.subr.mxu0 0.0
    %526 = vmatpush1.msra.mxu0 0.0
    %527 = vmatprep.subr.mxu0 0.0
    %528 = vmatpush1.msra.mxu0 0.0
    %529 = vmatprep.subr.mxu0 0.0
    %530 = vmatpush1.msra.mxu0 0.0
    %531 = vmatprep.subr.mxu0 0.0
    %532 = vmatpush1.msra.mxu0 0.0
    %533 = vmatprep.subr.mxu0 0.0
    %534 = vmatpush1.msra.mxu0 0.0
    %535 = vmatprep.subr.mxu0 0.0
    %536 = vmatpush1.msra.mxu0 0.0
    %537 = vmatprep.subr.mxu0 0.0
    %538 = vmatpush1.msra.mxu0 0.0
    %539 = vmatprep.subr.mxu0 0.0
    %540 = vmatpush1.msra.mxu0 0.0
    %541 = vmatprep.subr.mxu0 0.0
    %542 = vmatpush1.msra.mxu0 0.0
    %543 = vmatprep.subr.mxu0 0.0
    %544 = vmatpush1.msra.mxu0 0.0
    %545 = vmatprep.subr.mxu0 0.0
    %546 = vmatpush1.msra.mxu0 0.0
    %547 = vmatprep.subr.mxu0 0.0
    %548 = vmatpush1.msra.mxu0 0.0
    %549 = vmatprep.subr.mxu0 0.0
    %550 = vmatpush1.msra.mxu0 0.0
    %551 = vmatprep.subr.mxu0 0.0
    %552 = vmatpush1.msra.mxu0 0.0
    %553 = vmatprep.subr.mxu0 0.0
    %554 = vmatpush1.msra.mxu0 0.0
    %555 = vmatprep.subr.mxu0 0.0
    %556 = vmatpush1.msra.mxu0 0.0
    %557 = vmatprep.subr.mxu0 0.0
    %558 = vmatpush1.msra.mxu0 0.0
    %559 = vmatprep.subr.mxu0 0.0
    %560 = vmatpush1.msra.mxu0 0.0
    %561 = vmatprep.subr.mxu0 0.0
    %562 = vmatpush1.msra.mxu0 0.0
    %563 = vmatprep.subr.mxu0 0.0
    %564 = vmatpush1.msra.mxu0 0.0
    %565 = vmatprep.subr.mxu0 0.0
    %566 = vmatpush1.msra.mxu0 0.0
    %567 = vmatprep.mubr.f32.mxu0 0.0
    %568 = vmatmul.mubr.f32.gmra.mrb[0].mxu0 %v501
    %v569 = vpop.f32.mrb[0].mxu0
    %v570 = vadd.f32 %v498, %v569
    %v571 = vpop.f32.mrb[0].mxu0
    %572 = vdwg.mxu0
    %v573 = vmax.f32 %v570, 0.0
    %v574 = vld [vmem:[#allocation3 + $0x270] sm:$0xf]
    %v575 = vld [vmem:[#allocation3 + $0x278] sm:$0x1]
    %v576 = vlaneseq
    %v577 = vshrl.u32 %v576, 7
    %v578 = vsub.s32 0, %v577
    %v579 = vrot.slane %v575, %v578
    %vm580 = vcmask 31744
    %v582 = vsel %vm580, %v573, 0
    %vm584 = vcmask 1043456
    %v586 = vsel %vm584, %v574, 0
    %588 = vmatprep.subr.mxu0 0.0
    %589 = vmatpush1.msra.mxu0 %v586
    %590 = vmatprep.subr.mxu0 0.0
    %591 = vmatpush1.msra.mxu0 0.0
    %592 = vmatprep.subr.mxu0 0.0
    %593 = vmatpush1.msra.mxu0 0.0
    %594 = vmatprep.subr.mxu0 0.0
    %595 = vmatpush1.msra.mxu0 0.0
    %596 = vmatprep.subr.mxu0 0.0
    %597 = vmatpush1.msra.mxu0 0.0
    %598 = vmatprep.subr.mxu0 0.0
    %599 = vmatpush1.msra.mxu0 0.0
    %600 = vmatprep.subr.mxu0 0.0
    %601 = vmatpush1.msra.mxu0 0.0
    %602 = vmatprep.subr.mxu0 0.0
    %603 = vmatpush1.msra.mxu0 0.0
    %604 = vmatprep.subr.mxu0 0.0
    %605 = vmatpush1.msra.mxu0 0.0
    %606 = vmatprep.subr.mxu0 0.0
    %607 = vmatpush1.msra.mxu0 0.0
    %608 = vmatprep.subr.mxu0 0.0
    %609 = vmatpush1.msra.mxu0 0.0
    %610 = vmatprep.subr.mxu0 0.0
    %611 = vmatpush1.msra.mxu0 0.0
    %612 = vmatprep.subr.mxu0 0.0
    %613 = vmatpush1.msra.mxu0 0.0
    %614 = vmatprep.subr.mxu0 0.0
    %615 = vmatpush1.msra.mxu0 0.0
    %616 = vmatprep.subr.mxu0 0.0
    %617 = vmatpush1.msra.mxu0 0.0
    %618 = vmatprep.subr.mxu0 0.0
    %619 = vmatpush1.msra.mxu0 0.0
    %620 = vmatprep.subr.mxu0 0.0
    %621 = vmatpush1.msra.mxu0 0.0
    %622 = vmatprep.subr.mxu0 0.0
    %623 = vmatpush1.msra.mxu0 0.0
    %624 = vmatprep.subr.mxu0 0.0
    %625 = vmatpush1.msra.mxu0 0.0
    %626 = vmatprep.subr.mxu0 0.0
    %627 = vmatpush1.msra.mxu0 0.0
    %628 = vmatprep.subr.mxu0 0.0
    %629 = vmatpush1.msra.mxu0 0.0
    %630 = vmatprep.subr.mxu0 0.0
    %631 = vmatpush1.msra.mxu0 0.0
    %632 = vmatprep.subr.mxu0 0.0
    %633 = vmatpush1.msra.mxu0 0.0
    %634 = vmatprep.subr.mxu0 0.0
    %635 = vmatpush1.msra.mxu0 0.0
    %636 = vmatprep.subr.mxu0 0.0
    %637 = vmatpush1.msra.mxu0 0.0
    %638 = vmatprep.subr.mxu0 0.0
    %639 = vmatpush1.msra.mxu0 0.0
    %640 = vmatprep.subr.mxu0 0.0
    %641 = vmatpush1.msra.mxu0 0.0
    %642 = vmatprep.subr.mxu0 0.0
    %643 = vmatpush1.msra.mxu0 0.0
    %644 = vmatprep.subr.mxu0 0.0
    %645 = vmatpush1.msra.mxu0 0.0
    %646 = vmatprep.subr.mxu0 0.0
    %647 = vmatpush1.msra.mxu0 0.0
    %648 = vmatprep.subr.mxu0 0.0
    %649 = vmatpush1.msra.mxu0 0.0
    %650 = vmatprep.subr.mxu0 0.0
    %651 = vmatpush1.msra.mxu0 0.0
    %652 = vmatprep.mubr.f32.mxu0 0.0
    %653 = vmatmul.mubr.f32.gmra.mrb[0].mxu0 %v582
    %v654 = vpop.f32.mrb[0].mxu0
    %v655 = vadd.f32 %v579, %v654
    %v656 = vpop.f32.mrb[0].mxu0
    %657 = vdwg.mxu0
    %v658 = vxor.u32 %v655, 2147483648
    %v659 = vmul.f32 %v658, 1.442695
    %v660 = vpow.pop %v659
    %v661 = vadd.f32 %v660, 1.0
    %v662 = vrcp.pop %v661
    %v663 = vmul.f32 1.0, %v662
    %v664 = vld [vmem:[#allocation3 + $0x238] sm:$0xff]
    %v665 = vld [vmem:[#allocation3 + $0x240] sm:$0xff]
    %v666 = vld [vmem:[#allocation3 + $0x248] sm:$0xff]
    %v667 = vld [vmem:[#allocation3 + $0x250] sm:$0xff]
    %vm668 = vcmask 15360
    %v670 = vsel %vm668, %v664, 0
    %v673 = vsel %vm668, %v665, 0
    %v676 = vsel %vm668, %v666, 0
    %v679 = vsel %vm668, %v667, 0
    %vm681 = vcmask 1041408
    %v683 = vsel %vm681, %v663, 0
    %685 = vmatprep.subr.mxu0 0.0
    %686 = vmatpush1.msra.mxu0 %v683
    %687 = vmatprep.subr.mxu0 0.0
    %688 = vmatpush1.msra.mxu0 0.0
    %689 = vmatprep.subr.mxu0 0.0
    %690 = vmatpush1.msra.mxu0 0.0
    %691 = vmatprep.subr.mxu0 0.0
    %692 = vmatpush1.msra.mxu0 0.0
    %693 = vmatprep.subr.mxu0 0.0
    %694 = vmatpush1.msra.mxu0 0.0
    %695 = vmatprep.subr.mxu0 0.0
    %696 = vmatpush1.msra.mxu0 0.0
    %697 = vmatprep.subr.mxu0 0.0
    %698 = vmatpush1.msra.mxu0 0.0
    %699 = vmatprep.subr.mxu0 0.0
    %700 = vmatpush1.msra.mxu0 0.0
    %701 = vmatprep.subr.mxu0 0.0
    %702 = vmatpush1.msra.mxu0 0.0
    %703 = vmatprep.subr.mxu0 0.0
    %704 = vmatpush1.msra.mxu0 0.0
    %705 = vmatprep.subr.mxu0 0.0
    %706 = vmatpush1.msra.mxu0 0.0
    %707 = vmatprep.subr.mxu0 0.0
    %708 = vmatpush1.msra.mxu0 0.0
    %709 = vmatprep.subr.mxu0 0.0
    %710 = vmatpush1.msra.mxu0 0.0
    %711 = vmatprep.subr.mxu0 0.0
    %712 = vmatpush1.msra.mxu0 0.0
    %713 = vmatprep.subr.mxu0 0.0
    %714 = vmatpush1.msra.mxu0 0.0
    %715 = vmatprep.subr.mxu0 0.0
    %716 = vmatpush1.msra.mxu0 0.0
    %717 = vmatprep.subr.mxu0 0.0
    %718 = vmatpush1.msra.mxu0 0.0
    %719 = vmatprep.subr.mxu0 0.0
    %720 = vmatpush1.msra.mxu0 0.0
    %721 = vmatprep.subr.mxu0 0.0
    %722 = vmatpush1.msra.mxu0 0.0
    %723 = vmatprep.subr.mxu0 0.0
    %724 = vmatpush1.msra.mxu0 0.0
    %725 = vmatprep.subr.mxu0 0.0
    %726 = vmatpush1.msra.mxu0 0.0
    %727 = vmatprep.subr.mxu0 0.0
    %728 = vmatpush1.msra.mxu0 0.0
    %729 = vmatprep.subr.mxu0 0.0
    %730 = vmatpush1.msra.mxu0 0.0
    %731 = vmatprep.subr.mxu0 0.0
    %732 = vmatpush1.msra.mxu0 0.0
    %733 = vmatprep.subr.mxu0 0.0
    %734 = vmatpush1.msra.mxu0 0.0
    %735 = vmatprep.subr.mxu0 0.0
    %736 = vmatpush1.msra.mxu0 0.0
    %737 = vmatprep.subr.mxu0 0.0
    %738 = vmatpush1.msra.mxu0 0.0
    %739 = vmatprep.subr.mxu0 0.0
    %740 = vmatpush1.msra.mxu0 0.0
    %741 = vmatprep.subr.mxu0 0.0
    %742 = vmatpush1.msra.mxu0 0.0
    %743 = vmatprep.subr.mxu0 0.0
    %744 = vmatpush1.msra.mxu0 0.0
    %745 = vmatprep.subr.mxu0 0.0
    %746 = vmatpush1.msra.mxu0 0.0
    %747 = vmatprep.subr.mxu0 0.0
    %748 = vmatpush1.msra.mxu0 0.0
    %749 = vmatprep.mubr.f32.mxu0 0.0
    %750 = vmatmul.mubr.f32.gmra.mrb[0].mxu0 %v670
    %v751 = vpop.f32.mrb[0].mxu0
    %v752 = vadd.f32 0.0, %v751
    %v753 = vpop.f32.mrb[0].mxu0
    %754 = vmatprep.mubr.f32.mxu0 0.0
    %755 = vmatmul.mubr.f32.gmra.mrb[0].mxu0 %v673
    %v756 = vpop.f32.mrb[0].mxu0
    %v757 = vadd.f32 0.0, %v756
    %v758 = vpop.f32.mrb[0].mxu0
    %759 = vmatprep.mubr.f32.mxu0 0.0
    %760 = vmatmul.mubr.f32.gmra.mrb[0].mxu0 %v676
    %v761 = vpop.f32.mrb[0].mxu0
    %v762 = vadd.f32 0.0, %v761
    %v763 = vpop.f32.mrb[0].mxu0
    %764 = vmatprep.mubr.f32.mxu0 0.0
    %765 = vmatmul.mubr.f32.gmra.mrb[0].mxu0 %v679
    %v766 = vpop.f32.mrb[0].mxu0
    %v767 = vadd.f32 0.0, %v766
    %v768 = vpop.f32.mrb[0].mxu0
    %769 = vdwg.mxu0
    %v770 = vld [vmem:[#allocation3 + $0x258] sm:$0xff]
    %v772 = vsel %vm499, %v752, 0
    %v775 = vsel %vm499, %v757, 0
    %v778 = vsel %vm499, %v762, 0
    %v781 = vsel %vm499, %v767, 0
    %783 = vmatprep.subr.mxu0 0.0
    %784 = vmatpush1.msra.mxu0 %v770
    %785 = vmatprep.subr.mxu0 0.0
    %786 = vmatpush1.msra.mxu0 0.0
    %787 = vmatprep.subr.mxu0 0.0
    %788 = vmatpush1.msra.mxu0 0.0
    %789 = vmatprep.subr.mxu0 0.0
    %790 = vmatpush1.msra.mxu0 0.0
    %791 = vmatprep.subr.mxu0 0.0
    %792 = vmatpush1.msra.mxu0 0.0
    %793 = vmatprep.subr.mxu0 0.0
    %794 = vmatpush1.msra.mxu0 0.0
    %795 = vmatprep.subr.mxu0 0.0
    %796 = vmatpush1.msra.mxu0 0.0
    %797 = vmatprep.subr.mxu0 0.0
    %798 = vmatpush1.msra.mxu0 0.0
    %799 = vmatprep.subr.mxu0 0.0
    %800 = vmatpush1.msra.mxu0 0.0
    %801 = vmatprep.subr.mxu0 0.0
    %802 = vmatpush1.msra.mxu0 0.0
    %803 = vmatprep.subr.mxu0 0.0
    %804 = vmatpush1.msra.mxu0 0.0
    %805 = vmatprep.subr.mxu0 0.0
    %806 = vmatpush1.msra.mxu0 0.0
    %807 = vmatprep.subr.mxu0 0.0
    %808 = vmatpush1.msra.mxu0 0.0
    %809 = vmatprep.subr.mxu0 0.0
    %810 = vmatpush1.msra.mxu0 0.0
    %811 = vmatprep.subr.mxu0 0.0
    %812 = vmatpush1.msra.mxu0 0.0
    %813 = vmatprep.subr.mxu0 0.0
    %814 = vmatpush1.msra.mxu0 0.0
    %815 = vmatprep.subr.mxu0 0.0
    %816 = vmatpush1.msra.mxu0 0.0
    %817 = vmatprep.subr.mxu0 0.0
    %818 = vmatpush1.msra.mxu0 0.0
    %819 = vmatprep.subr.mxu0 0.0
    %820 = vmatpush1.msra.mxu0 0.0
    %821 = vmatprep.subr.mxu0 0.0
    %822 = vmatpush1.msra.mxu0 0.0
    %823 = vmatprep.subr.mxu0 0.0
    %824 = vmatpush1.msra.mxu0 0.0
    %825 = vmatprep.subr.mxu0 0.0
    %826 = vmatpush1.msra.mxu0 0.0
    %827 = vmatprep.subr.mxu0 0.0
    %828 = vmatpush1.msra.mxu0 0.0
    %829 = vmatprep.subr.mxu0 0.0
    %830 = vmatpush1.msra.mxu0 0.0
    %831 = vmatprep.subr.mxu0 0.0
    %832 = vmatpush1.msra.mxu0 0.0
    %833 = vmatprep.subr.mxu0 0.0
    %834 = vmatpush1.msra.mxu0 0.0
    %835 = vmatprep.subr.mxu0 0.0
    %836 = vmatpush1.msra.mxu0 0.0
    %837 = vmatprep.subr.mxu0 0.0
    %838 = vmatpush1.msra.mxu0 0.0
    %839 = vmatprep.subr.mxu0 0.0
    %840 = vmatpush1.msra.mxu0 0.0
    %841 = vmatprep.subr.mxu0 0.0
    %842 = vmatpush1.msra.mxu0 0.0
    %843 = vmatprep.subr.mxu0 0.0
    %844 = vmatpush1.msra.mxu0 0.0
    %845 = vmatprep.subr.mxu0 0.0
    %846 = vmatpush1.msra.mxu0 0.0
    %847 = vmatprep.mubr.f32.mxu0 0.0
    %848 = vmatmul.mubr.f32.gmra.mrb[0].mxu0 %v772
    %v849 = vpop.f32.mrb[0].mxu0
    %v850 = vadd.f32 0.0, %v849
    %v851 = vpop.f32.mrb[0].mxu0
    %852 = vmatprep.mubr.f32.mxu0 0.0
    %853 = vmatmul.mubr.f32.gmra.mrb[0].mxu0 %v775
    %v854 = vpop.f32.mrb[0].mxu0
    %v855 = vadd.f32 0.0, %v854
    %v856 = vpop.f32.mrb[0].mxu0
    %857 = vmatprep.mubr.f32.mxu0 0.0
    %858 = vmatmul.mubr.f32.gmra.mrb[0].mxu0 %v778
    %v859 = vpop.f32.mrb[0].mxu0
    %v860 = vadd.f32 0.0, %v859
    %v861 = vpop.f32.mrb[0].mxu0
    %862 = vmatprep.mubr.f32.mxu0 0.0
    %863 = vmatmul.mubr.f32.gmra.mrb[0].mxu0 %v781
    %v864 = vpop.f32.mrb[0].mxu0
    %v865 = vadd.f32 0.0, %v864
    %v866 = vpop.f32.mrb[0].mxu0
    %867 = vdwg.mxu0
    %v868 = vmul.f32 %v366, %v850
    %v869 = vmul.f32 %v367, %v855
    %v870 = vmul.f32 %v368, %v860
    %v871 = vmul.f32 %v369, %v865
    %v872 = vld [vmem:[#allocation3 + $0x1b0] sm:$0xff]
    %v873 = vld [vmem:[#allocation3 + $0x1b8] sm:$0xff]
    %v874 = vld [vmem:[#allocation3 + $0x1c0] sm:$0xff]
    %v875 = vld [vmem:[#allocation3 + $0x1c8] sm:$0xff]
    %v876 = vld [vmem:[#allocation3 + $0x1d0] sm:$0xff]
    %v877 = vld [vmem:[#allocation3 + $0x1d8] sm:$0xff]
    %v878 = vld [vmem:[#allocation3 + $0x1e0] sm:$0xff]
    %v879 = vld [vmem:[#allocation3 + $0x1e8] sm:$0xff]
    %v880 = vld [vmem:[#allocation3 + $0x1f0] sm:$0xff]
    %v881 = vld [vmem:[#allocation3 + $0x1f8] sm:$0xff]
    %v882 = vld [vmem:[#allocation3 + $0x200] sm:$0xff]
    %v883 = vld [vmem:[#allocation3 + $0x208] sm:$0xff]
    %v884 = vld [vmem:[#allocation3 + $0x210] sm:$0xff]
    %v885 = vld [vmem:[#allocation3 + $0x218] sm:$0xff]
    %v886 = vld [vmem:[#allocation3 + $0x220] sm:$0xff]
    %v887 = vld [vmem:[#allocation3 + $0x228] sm:$0xff]
    %888 = vmatprep.subr.mxu0 0.0
    %889 = vmatpush1.msra.mxu0 %v872
    %890 = vmatprep.subr.mxu0 0.0
    %891 = vmatpush1.msra.mxu0 %v873
    %892 = vmatprep.subr.mxu0 0.0
    %893 = vmatpush1.msra.mxu0 %v874
    %894 = vmatprep.subr.mxu0 0.0
    %895 = vmatpush1.msra.mxu0 %v875
    %896 = vmatprep.subr.mxu0 0.0
    %897 = vmatpush1.msra.mxu0 %v876
    %898 = vmatprep.subr.mxu0 0.0
    %899 = vmatpush1.msra.mxu0 %v877
    %900 = vmatprep.subr.mxu0 0.0
    %901 = vmatpush1.msra.mxu0 %v878
    %902 = vmatprep.subr.mxu0 0.0
    %903 = vmatpush1.msra.mxu0 %v879
    %904 = vmatprep.subr.mxu0 0.0
    %905 = vmatpush1.msra.mxu0 %v880
    %906 = vmatprep.subr.mxu0 0.0
    %907 = vmatpush1.msra.mxu0 %v881
    %908 = vmatprep.subr.mxu0 0.0
    %909 = vmatpush1.msra.mxu0 %v882
    %910 = vmatprep.subr.mxu0 0.0
    %911 = vmatpush1.msra.mxu0 %v883
    %912 = vmatprep.subr.mxu0 0.0
    %913 = vmatpush1.msra.mxu0 %v884
    %914 = vmatprep.subr.mxu0 0.0
    %915 = vmatpush1.msra.mxu0 %v885
    %916 = vmatprep.subr.mxu0 0.0
    %917 = vmatpush1.msra.mxu0 %v886
    %918 = vmatprep.subr.mxu0 0.0
    %919 = vmatpush1.msra.mxu0 %v887
    %920 = vmatprep.subr.mxu0 0.0
    %921 = vmatpush1.msra.mxu0 0.0
    %922 = vmatprep.subr.mxu0 0.0
    %923 = vmatpush1.msra.mxu0 0.0
    %924 = vmatprep.subr.mxu0 0.0
    %925 = vmatpush1.msra.mxu0 0.0
    %926 = vmatprep.subr.mxu0 0.0
    %927 = vmatpush1.msra.mxu0 0.0
    %928 = vmatprep.subr.mxu0 0.0
    %929 = vmatpush1.msra.mxu0 0.0
    %930 = vmatprep.subr.mxu0 0.0
    %931 = vmatpush1.msra.mxu0 0.0
    %932 = vmatprep.subr.mxu0 0.0
    %933 = vmatpush1.msra.mxu0 0.0
    %934 = vmatprep.subr.mxu0 0.0
    %935 = vmatpush1.msra.mxu0 0.0
    %936 = vmatprep.subr.mxu0 0.0
    %937 = vmatpush1.msra.mxu0 0.0
    %938 = vmatprep.subr.mxu0 0.0
    %939 = vmatpush1.msra.mxu0 0.0
    %940 = vmatprep.subr.mxu0 0.0
    %941 = vmatpush1.msra.mxu0 0.0
    %942 = vmatprep.subr.mxu0 0.0
    %943 = vmatpush1.msra.mxu0 0.0
    %944 = vmatprep.subr.mxu0 0.0
    %945 = vmatpush1.msra.mxu0 0.0
    %946 = vmatprep.subr.mxu0 0.0
    %947 = vmatpush1.msra.mxu0 0.0
    %948 = vmatprep.subr.mxu0 0.0
    %949 = vmatpush1.msra.mxu0 0.0
    %950 = vmatprep.subr.mxu0 0.0
    %951 = vmatpush1.msra.mxu0 0.0
    %952 = vmatprep.mubr.f32.mxu0 0.0
    %953 = vmatmul.mubr.f32.gmra.mrb[0].mxu0 %v868
    %v954 = vpop.f32.mrb[0].mxu0
    %v955 = vadd.f32 0.0, %v954
    %v956 = vpop.f32.mrb[0].mxu0
    %957 = vmatprep.mubr.f32.mxu0 0.0
    %958 = vmatmul.mubr.f32.gmra.mrb[0].mxu0 %v869
    %v959 = vpop.f32.mrb[0].mxu0
    %v960 = vadd.f32 0.0, %v959
    %v961 = vpop.f32.mrb[0].mxu0
    %962 = vmatprep.mubr.f32.mxu0 0.0
    %963 = vmatmul.mubr.f32.gmra.mrb[0].mxu0 %v870
    %v964 = vpop.f32.mrb[0].mxu0
    %v965 = vadd.f32 0.0, %v964
    %v966 = vpop.f32.mrb[0].mxu0
    %967 = vmatprep.mubr.f32.mxu0 0.0
    %968 = vmatmul.mubr.f32.gmra.mrb[0].mxu0 %v871
    %v969 = vpop.f32.mrb[0].mxu0
    %v970 = vadd.f32 0.0, %v969
    %v971 = vpop.f32.mrb[0].mxu0
    %972 = vdwg.mxu0
    %973 = vrot.lane.b32.xlu0 %v955, 16
    %v974 = vpop.permute.xlu0 %973
    %975 = vrot.lane.b32.xlu0 %v960, 16
    %v976 = vpop.permute.xlu0 %975
    %977 = vrot.lane.b32.xlu0 %v965, 16
    %v978 = vpop.permute.xlu0 %977
    %979 = vrot.lane.b32.xlu0 %v970, 16
    %v980 = vpop.permute.xlu0 %979
    %v981 = vadd.f32 %v955, %v974
    %v982 = vadd.f32 %v960, %v976
    %v983 = vadd.f32 %v965, %v978
    %v984 = vadd.f32 %v970, %v980
    %v985 = vmax.f32 %v955, %v974
    %v986 = vmax.f32 %v960, %v976
    %v987 = vmax.f32 %v965, %v978
    %v988 = vmax.f32 %v970, %v980
    %989 = vrot.lane.b32.xlu0 %v981, 32
    %v990 = vpop.permute.xlu0 %989
    %991 = vrot.lane.b32.xlu0 %v982, 32
    %v992 = vpop.permute.xlu0 %991
    %993 = vrot.lane.b32.xlu0 %v983, 32
    %v994 = vpop.permute.xlu0 %993
    %995 = vrot.lane.b32.xlu0 %v984, 32
    %v996 = vpop.permute.xlu0 %995
    %v997 = vadd.f32 %v981, %v990
    %v998 = vadd.f32 %v982, %v992
    %v999 = vadd.f32 %v983, %v994
    %v1000 = vadd.f32 %v984, %v996
    %1001 = vrot.lane.b32.xlu0 %v985, 32
    %v1002 = vpop.permute.xlu0 %1001
    %1003 = vrot.lane.b32.xlu0 %v986, 32
    %v1004 = vpop.permute.xlu0 %1003
    %1005 = vrot.lane.b32.xlu0 %v987, 32
    %v1006 = vpop.permute.xlu0 %1005
    %1007 = vrot.lane.b32.xlu0 %v988, 32
    %v1008 = vpop.permute.xlu0 %1007
    %v1009 = vmax.f32 %v985, %v1002
    %v1010 = vmax.f32 %v986, %v1004
    %v1011 = vmax.f32 %v987, %v1006
    %v1012 = vmax.f32 %v988, %v1008
    %1013 = vrot.lane.b32.xlu0 %v997, 64
    %v1014 = vpop.permute.xlu0 %1013
    %1015 = vrot.lane.b32.xlu0 %v998, 64
    %v1016 = vpop.permute.xlu0 %1015
    %1017 = vrot.lane.b32.xlu0 %v999, 64
    %v1018 = vpop.permute.xlu0 %1017
    %1019 = vrot.lane.b32.xlu0 %v1000, 64
    %v1020 = vpop.permute.xlu0 %1019
    %v1021 = vadd.f32 %v997, %v1014
    %v1022 = vadd.f32 %v998, %v1016
    %v1023 = vadd.f32 %v999, %v1018
    %v1024 = vadd.f32 %v1000, %v1020
    %1025 = vrot.lane.b32.xlu0 %v1009, 64
    %v1026 = vpop.permute.xlu0 %1025
    %1027 = vrot.lane.b32.xlu0 %v1010, 64
    %v1028 = vpop.permute.xlu0 %1027
    %1029 = vrot.lane.b32.xlu0 %v1011, 64
    %v1030 = vpop.permute.xlu0 %1029
    %1031 = vrot.lane.b32.xlu0 %v1012, 64
    %v1032 = vpop.permute.xlu0 %1031
    %v1033 = vmax.f32 %v1009, %v1026
    %v1034 = vmax.f32 %v1010, %v1028
    %v1035 = vmax.f32 %v1011, %v1030
    %v1036 = vmax.f32 %v1012, %v1032
    %1037 = vst.msk [vmem:[#allocation2] sm:$0xff] %vm419, 0.0
    %1038 = vst.msk [vmem:[#allocation2 + $0x8] sm:$0xff] %vm419, 0.0
    %1039 = vst.msk [vmem:[#allocation2 + $0x10] sm:$0xff] %vm419, 0.0
    %1040 = vst.msk [vmem:[#allocation2 + $0x18] sm:$0xff] %vm419, 0.0
    %1041 = vst.msk [vmem:[#allocation2 + $0x20] sm:$0xff] %vm419, 0.0
    %1042 = vst.msk [vmem:[#allocation2 + $0x28] sm:$0xff] %vm419, 0.0
    %1043 = vst.msk [vmem:[#allocation2 + $0x30] sm:$0xff] %vm419, 0.0
    %1044 = vst.msk [vmem:[#allocation2 + $0x38] sm:$0xff] %vm419, 0.0
    %vm1045 = vcmask 130048
    %1046 = vst.msk [vmem:[#allocation2 + $0x8] sm:$0xff] %vm1045, %v1021
    %1047 = vst.msk [vmem:[#allocation2 + $0x10] sm:$0xff] %vm1045, %v1022
    %1048 = vst.msk [vmem:[#allocation2 + $0x28] sm:$0xff] %vm1045, %v1023
    %1049 = vst.msk [vmem:[#allocation2 + $0x30] sm:$0xff] %vm1045, %v1024
    %1054 = vrot.lane.b32.xlu0 %v1033, 16
    %v1055 = vpop.permute.xlu0 %1054
    %1056 = vrot.lane.b32.xlu0 %v1034, 16
    %v1057 = vpop.permute.xlu0 %1056
    %1058 = vrot.lane.b32.xlu0 %v1035, 16
    %v1059 = vpop.permute.xlu0 %1058
    %1060 = vrot.lane.b32.xlu0 %v1036, 16
    %v1061 = vpop.permute.xlu0 %1060
    %vm1066 = vcmask 261248
    %1067 = vst.msk [vmem:[#allocation2 + $0x8] sm:$0xff] %vm1066, %v1055
    %1068 = vst.msk [vmem:[#allocation2 + $0x10] sm:$0xff] %vm1066, %v1057
    %1069 = vst.msk [vmem:[#allocation2 + $0x28] sm:$0xff] %vm1066, %v1059
    %1070 = vst.msk [vmem:[#allocation2 + $0x30] sm:$0xff] %vm1066, %v1061
    %v1071 = vld [vmem:[#allocation2 + $0x5] sm:$0xff]
    %v1072 = vld [vmem:[#allocation2 + $0xd] sm:$0xff]
    %v1073 = vld [vmem:[#allocation2 + $0x25] sm:$0xff]
    %v1074 = vld [vmem:[#allocation2 + $0x2d] sm:$0xff]
    %v1075 = vld [vmem:[#allocation3 + $0xc8] sm:$0xff]
    %v1076 = vld [vmem:[#allocation3 + $0xd0] sm:$0xff]
    %v1077 = vld [vmem:[#allocation3 + $0xd8] sm:$0xff]
    %v1078 = vld [vmem:[#allocation3 + $0xe0] sm:$0xff]
    %v1079 = vld [vmem:[#allocation2 + $0x6] sm:$0xff]
    %v1080 = vld [vmem:[#allocation2 + $0xe] sm:$0xff]
    %v1081 = vld [vmem:[#allocation2 + $0x26] sm:$0xff]
    %v1082 = vld [vmem:[#allocation2 + $0x2e] sm:$0xff]
    %v1083 = vld [vmem:[#allocation3 + $0xe8] sm:$0xff]
    %v1084 = vld [vmem:[#allocation3 + $0xf0] sm:$0xff]
    %v1085 = vld [vmem:[#allocation3 + $0xf8] sm:$0xff]
    %v1086 = vld [vmem:[#allocation3 + $0x100] sm:$0xff]
    %v1088 = vsel %vm419, %v1079, 0
    %v1091 = vsel %vm419, %v1080, 0
    %v1094 = vsel %vm419, %v1081, 0
    %v1097 = vsel %vm419, %v1082, 0
    %1099 = vmatprep.subr.mxu0 0.0
    %1100 = vmatpush1.msra.mxu0 %v1083
    %1101 = vmatprep.subr.mxu0 0.0
    %1102 = vmatpush1.msra.mxu0 %v1084
    %1103 = vmatprep.subr.mxu0 0.0
    %1104 = vmatpush1.msra.mxu0 %v1085
    %1105 = vmatprep.subr.mxu0 0.0
    %1106 = vmatpush1.msra.mxu0 %v1086
    %1107 = vmatprep.subr.mxu0 0.0
    %1108 = vmatpush1.msra.mxu0 0.0
    %1109 = vmatprep.subr.mxu0 0.0
    %1110 = vmatpush1.msra.mxu0 0.0
    %1111 = vmatprep.subr.mxu0 0.0
    %1112 = vmatpush1.msra.mxu0 0.0
    %1113 = vmatprep.subr.mxu0 0.0
    %1114 = vmatpush1.msra.mxu0 0.0
    %1115 = vmatprep.subr.mxu0 0.0
    %1116 = vmatpush1.msra.mxu0 0.0
    %1117 = vmatprep.subr.mxu0 0.0
    %1118 = vmatpush1.msra.mxu0 0.0
    %1119 = vmatprep.subr.mxu0 0.0
    %1120 = vmatpush1.msra.mxu0 0.0
    %1121 = vmatprep.subr.mxu0 0.0
    %1122 = vmatpush1.msra.mxu0 0.0
    %1123 = vmatprep.subr.mxu0 0.0
    %1124 = vmatpush1.msra.mxu0 0.0
    %1125 = vmatprep.subr.mxu0 0.0
    %1126 = vmatpush1.msra.mxu0 0.0
    %1127 = vmatprep.subr.mxu0 0.0
    %1128 = vmatpush1.msra.mxu0 0.0
    %1129 = vmatprep.subr.mxu0 0.0
    %1130 = vmatpush1.msra.mxu0 0.0
    %1131 = vmatprep.subr.mxu0 0.0
    %1132 = vmatpush1.msra.mxu0 0.0
    %1133 = vmatprep.subr.mxu0 0.0
    %1134 = vmatpush1.msra.mxu0 0.0
    %1135 = vmatprep.subr.mxu0 0.0
    %1136 = vmatpush1.msra.mxu0 0.0
    %1137 = vmatprep.subr.mxu0 0.0
    %1138 = vmatpush1.msra.mxu0 0.0
    %1139 = vmatprep.subr.mxu0 0.0
    %1140 = vmatpush1.msra.mxu0 0.0
    %1141 = vmatprep.subr.mxu0 0.0
    %1142 = vmatpush1.msra.mxu0 0.0
    %1143 = vmatprep.subr.mxu0 0.0
    %1144 = vmatpush1.msra.mxu0 0.0
    %1145 = vmatprep.subr.mxu0 0.0
    %1146 = vmatpush1.msra.mxu0 0.0
    %1147 = vmatprep.subr.mxu0 0.0
    %1148 = vmatpush1.msra.mxu0 0.0
    %1149 = vmatprep.subr.mxu0 0.0
    %1150 = vmatpush1.msra.mxu0 0.0
    %1151 = vmatprep.subr.mxu0 0.0
    %1152 = vmatpush1.msra.mxu0 0.0
    %1153 = vmatprep.subr.mxu0 0.0
    %1154 = vmatpush1.msra.mxu0 0.0
    %1155 = vmatprep.subr.mxu0 0.0
    %1156 = vmatpush1.msra.mxu0 0.0
    %1157 = vmatprep.subr.mxu0 0.0
    %1158 = vmatpush1.msra.mxu0 0.0
    %1159 = vmatprep.subr.mxu0 0.0
    %1160 = vmatpush1.msra.mxu0 0.0
    %1161 = vmatprep.subr.mxu0 0.0
    %1162 = vmatpush1.msra.mxu0 0.0
    %1163 = vmatprep.mubr.f32.mxu0 0.0
    %1164 = vmatmul.mubr.f32.gmra.mrb[0].mxu0 %v1088
    %v1165 = vpop.f32.mrb[0].mxu0
    %v1166 = vadd.f32 0.0, %v1165
    %v1167 = vpop.f32.mrb[0].mxu0
    %1168 = vmatprep.mubr.f32.mxu0 0.0
    %1169 = vmatmul.mubr.f32.gmra.mrb[0].mxu0 %v1091
    %v1170 = vpop.f32.mrb[0].mxu0
    %v1171 = vadd.f32 0.0, %v1170
    %v1172 = vpop.f32.mrb[0].mxu0
    %1173 = vmatprep.mubr.f32.mxu0 0.0
    %1174 = vmatmul.mubr.f32.gmra.mrb[0].mxu0 %v1094
    %v1175 = vpop.f32.mrb[0].mxu0
    %v1176 = vadd.f32 0.0, %v1175
    %v1177 = vpop.f32.mrb[0].mxu0
    %1178 = vmatprep.mubr.f32.mxu0 0.0
    %1179 = vmatmul.mubr.f32.gmra.mrb[0].mxu0 %v1097
    %v1180 = vpop.f32.mrb[0].mxu0
    %v1181 = vadd.f32 0.0, %v1180
    %v1182 = vpop.f32.mrb[0].mxu0
    %1183 = vdwg.mxu0
    %v1185 = vsel %vm419, %v1071, 0
    %v1188 = vsel %vm419, %v1072, 0
    %v1191 = vsel %vm419, %v1073, 0
    %v1194 = vsel %vm419, %v1074, 0
    %1196 = vmatprep.subr.mxu0 0.0
    %1197 = vmatpush1.msra.mxu0 %v1075
    %1198 = vmatprep.subr.mxu0 0.0
    %1199 = vmatpush1.msra.mxu0 %v1076
    %1200 = vmatprep.subr.mxu0 0.0
    %1201 = vmatpush1.msra.mxu0 %v1077
    %1202 = vmatprep.subr.mxu0 0.0
    %1203 = vmatpush1.msra.mxu0 %v1078
    %1204 = vmatprep.subr.mxu0 0.0
    %1205 = vmatpush1.msra.mxu0 0.0
    %1206 = vmatprep.subr.mxu0 0.0
    %1207 = vmatpush1.msra.mxu0 0.0
    %1208 = vmatprep.subr.mxu0 0.0
    %1209 = vmatpush1.msra.mxu0 0.0
    %1210 = vmatprep.subr.mxu0 0.0
    %1211 = vmatpush1.msra.mxu0 0.0
    %1212 = vmatprep.subr.mxu0 0.0
    %1213 = vmatpush1.msra.mxu0 0.0
    %1214 = vmatprep.subr.mxu0 0.0
    %1215 = vmatpush1.msra.mxu0 0.0
    %1216 = vmatprep.subr.mxu0 0.0
    %1217 = vmatpush1.msra.mxu0 0.0
    %1218 = vmatprep.subr.mxu0 0.0
    %1219 = vmatpush1.msra.mxu0 0.0
    %1220 = vmatprep.subr.mxu0 0.0
    %1221 = vmatpush1.msra.mxu0 0.0
    %1222 = vmatprep.subr.mxu0 0.0
    %1223 = vmatpush1.msra.mxu0 0.0
    %1224 = vmatprep.subr.mxu0 0.0
    %1225 = vmatpush1.msra.mxu0 0.0
    %1226 = vmatprep.subr.mxu0 0.0
    %1227 = vmatpush1.msra.mxu0 0.0
    %1228 = vmatprep.subr.mxu0 0.0
    %1229 = vmatpush1.msra.mxu0 0.0
    %1230 = vmatprep.subr.mxu0 0.0
    %1231 = vmatpush1.msra.mxu0 0.0
    %1232 = vmatprep.subr.mxu0 0.0
    %1233 = vmatpush1.msra.mxu0 0.0
    %1234 = vmatprep.subr.mxu0 0.0
    %1235 = vmatpush1.msra.mxu0 0.0
    %1236 = vmatprep.subr.mxu0 0.0
    %1237 = vmatpush1.msra.mxu0 0.0
    %1238 = vmatprep.subr.mxu0 0.0
    %1239 = vmatpush1.msra.mxu0 0.0
    %1240 = vmatprep.subr.mxu0 0.0
    %1241 = vmatpush1.msra.mxu0 0.0
    %1242 = vmatprep.subr.mxu0 0.0
    %1243 = vmatpush1.msra.mxu0 0.0
    %1244 = vmatprep.subr.mxu0 0.0
    %1245 = vmatpush1.msra.mxu0 0.0
    %1246 = vmatprep.subr.mxu0 0.0
    %1247 = vmatpush1.msra.mxu0 0.0
    %1248 = vmatprep.subr.mxu0 0.0
    %1249 = vmatpush1.msra.mxu0 0.0
    %1250 = vmatprep.subr.mxu0 0.0
    %1251 = vmatpush1.msra.mxu0 0.0
    %1252 = vmatprep.subr.mxu0 0.0
    %1253 = vmatpush1.msra.mxu0 0.0
    %1254 = vmatprep.subr.mxu0 0.0
    %1255 = vmatpush1.msra.mxu0 0.0
    %1256 = vmatprep.subr.mxu0 0.0
    %1257 = vmatpush1.msra.mxu0 0.0
    %1258 = vmatprep.subr.mxu0 0.0
    %1259 = vmatpush1.msra.mxu0 0.0
    %1260 = vmatprep.mubr.f32.mxu0 0.0
    %1261 = vmatmul.mubr.f32.gmra.mrb[0].mxu0 %v1185
    %v1262 = vpop.f32.mrb[0].mxu0
    %v1263 = vadd.f32 %v1166, %v1262
    %v1264 = vpop.f32.mrb[0].mxu0
    %1265 = vmatprep.mubr.f32.mxu0 0.0
    %1266 = vmatmul.mubr.f32.gmra.mrb[0].mxu0 %v1188
    %v1267 = vpop.f32.mrb[0].mxu0
    %v1268 = vadd.f32 %v1171, %v1267
    %v1269 = vpop.f32.mrb[0].mxu0
    %1270 = vmatprep.mubr.f32.mxu0 0.0
    %1271 = vmatmul.mubr.f32.gmra.mrb[0].mxu0 %v1191
    %v1272 = vpop.f32.mrb[0].mxu0
    %v1273 = vadd.f32 %v1176, %v1272
    %v1274 = vpop.f32.mrb[0].mxu0
    %1275 = vmatprep.mubr.f32.mxu0 0.0
    %1276 = vmatmul.mubr.f32.gmra.mrb[0].mxu0 %v1194
    %v1277 = vpop.f32.mrb[0].mxu0
    %v1278 = vadd.f32 %v1181, %v1277
    %v1279 = vpop.f32.mrb[0].mxu0
    %1280 = vdwg.mxu0
    %v1281 = vld [vmem:[#allocation2 + $0x7] sm:$0xff]
    %v1282 = vld [vmem:[#allocation2 + $0xf] sm:$0xff]
    %v1283 = vld [vmem:[#allocation2 + $0x27] sm:$0xff]
    %v1284 = vld [vmem:[#allocation2 + $0x2f] sm:$0xff]
    %v1285 = vld [vmem:[#allocation3 + $0x108] sm:$0xff]
    %v1286 = vld [vmem:[#allocation3 + $0x110] sm:$0xff]
    %v1287 = vld [vmem:[#allocation3 + $0x118] sm:$0xff]
    %v1288 = vld [vmem:[#allocation3 + $0x120] sm:$0xff]
    %v1290 = vsel %vm419, %v1281, 0
    %v1293 = vsel %vm419, %v1282, 0
    %v1296 = vsel %vm419, %v1283, 0
    %v1299 = vsel %vm419, %v1284, 0
    %1301 = vmatprep.subr.mxu0 0.0
    %1302 = vmatpush1.msra.mxu0 %v1285
    %1303 = vmatprep.subr.mxu0 0.0
    %1304 = vmatpush1.msra.mxu0 %v1286
    %1305 = vmatprep.subr.mxu0 0.0
    %1306 = vmatpush1.msra.mxu0 %v1287
    %1307 = vmatprep.subr.mxu0 0.0
    %1308 = vmatpush1.msra.mxu0 %v1288
    %1309 = vmatprep.subr.mxu0 0.0
    %1310 = vmatpush1.msra.mxu0 0.0
    %1311 = vmatprep.subr.mxu0 0.0
    %1312 = vmatpush1.msra.mxu0 0.0
    %1313 = vmatprep.subr.mxu0 0.0
    %1314 = vmatpush1.msra.mxu0 0.0
    %1315 = vmatprep.subr.mxu0 0.0
    %1316 = vmatpush1.msra.mxu0 0.0
    %1317 = vmatprep.subr.mxu0 0.0
    %1318 = vmatpush1.msra.mxu0 0.0
    %1319 = vmatprep.subr.mxu0 0.0
    %1320 = vmatpush1.msra.mxu0 0.0
    %1321 = vmatprep.subr.mxu0 0.0
    %1322 = vmatpush1.msra.mxu0 0.0
    %1323 = vmatprep.subr.mxu0 0.0
    %1324 = vmatpush1.msra.mxu0 0.0
    %1325 = vmatprep.subr.mxu0 0.0
    %1326 = vmatpush1.msra.mxu0 0.0
    %1327 = vmatprep.subr.mxu0 0.0
    %1328 = vmatpush1.msra.mxu0 0.0
    %1329 = vmatprep.subr.mxu0 0.0
    %1330 = vmatpush1.msra.mxu0 0.0
    %1331 = vmatprep.subr.mxu0 0.0
    %1332 = vmatpush1.msra.mxu0 0.0
    %1333 = vmatprep.subr.mxu0 0.0
    %1334 = vmatpush1.msra.mxu0 0.0
    %1335 = vmatprep.subr.mxu0 0.0
    %1336 = vmatpush1.msra.mxu0 0.0
    %1337 = vmatprep.subr.mxu0 0.0
    %1338 = vmatpush1.msra.mxu0 0.0
    %1339 = vmatprep.subr.mxu0 0.0
    %1340 = vmatpush1.msra.mxu0 0.0
    %1341 = vmatprep.subr.mxu0 0.0
    %1342 = vmatpush1.msra.mxu0 0.0
    %1343 = vmatprep.subr.mxu0 0.0
    %1344 = vmatpush1.msra.mxu0 0.0
    %1345 = vmatprep.subr.mxu0 0.0
    %1346 = vmatpush1.msra.mxu0 0.0
    %1347 = vmatprep.subr.mxu0 0.0
    %1348 = vmatpush1.msra.mxu0 0.0
    %1349 = vmatprep.subr.mxu0 0.0
    %1350 = vmatpush1.msra.mxu0 0.0
    %1351 = vmatprep.subr.mxu0 0.0
    %1352 = vmatpush1.msra.mxu0 0.0
    %1353 = vmatprep.subr.mxu0 0.0
    %1354 = vmatpush1.msra.mxu0 0.0
    %1355 = vmatprep.subr.mxu0 0.0
    %1356 = vmatpush1.msra.mxu0 0.0
    %1357 = vmatprep.subr.mxu0 0.0
    %1358 = vmatpush1.msra.mxu0 0.0
    %1359 = vmatprep.subr.mxu0 0.0
    %1360 = vmatpush1.msra.mxu0 0.0
    %1361 = vmatprep.subr.mxu0 0.0
    %1362 = vmatpush1.msra.mxu0 0.0
    %1363 = vmatprep.subr.mxu0 0.0
    %1364 = vmatpush1.msra.mxu0 0.0
    %1365 = vmatprep.mubr.f32.mxu0 0.0
    %1366 = vmatmul.mubr.f32.gmra.mrb[0].mxu0 %v1290
    %v1367 = vpop.f32.mrb[0].mxu0
    %v1368 = vadd.f32 0.0, %v1367
    %v1369 = vpop.f32.mrb[0].mxu0
    %1370 = vmatprep.mubr.f32.mxu0 0.0
    %1371 = vmatmul.mubr.f32.gmra.mrb[0].mxu0 %v1293
    %v1372 = vpop.f32.mrb[0].mxu0
    %v1373 = vadd.f32 0.0, %v1372
    %v1374 = vpop.f32.mrb[0].mxu0
    %1375 = vmatprep.mubr.f32.mxu0 0.0
    %1376 = vmatmul.mubr.f32.gmra.mrb[0].mxu0 %v1296
    %v1377 = vpop.f32.mrb[0].mxu0
    %v1378 = vadd.f32 0.0, %v1377
    %v1379 = vpop.f32.mrb[0].mxu0
    %1380 = vmatprep.mubr.f32.mxu0 0.0
    %1381 = vmatmul.mubr.f32.gmra.mrb[0].mxu0 %v1299
    %v1382 = vpop.f32.mrb[0].mxu0
    %v1383 = vadd.f32 0.0, %v1382
    %v1384 = vpop.f32.mrb[0].mxu0
    %1385 = vdwg.mxu0
    %v1386 = vadd.f32 %v1263, %v1368
    %v1387 = vadd.f32 %v1268, %v1373
    %v1388 = vadd.f32 %v1273, %v1378
    %v1389 = vadd.f32 %v1278, %v1383
    %v1390 = vld [vmem:[#allocation2 + $0x8] sm:$0xff]
    %v1391 = vld [vmem:[#allocation2 + $0x10] sm:$0xff]
    %v1392 = vld [vmem:[#allocation2 + $0x28] sm:$0xff]
    %v1393 = vld [vmem:[#allocation2 + $0x30] sm:$0xff]
    %v1394 = vld [vmem:[#allocation3 + $0x128] sm:$0xff]
    %v1395 = vld [vmem:[#allocation3 + $0x130] sm:$0xff]
    %v1396 = vld [vmem:[#allocation3 + $0x138] sm:$0xff]
    %v1397 = vld [vmem:[#allocation3 + $0x140] sm:$0xff]
    %v1399 = vsel %vm419, %v1390, 0
    %v1402 = vsel %vm419, %v1391, 0
    %v1405 = vsel %vm419, %v1392, 0
    %v1408 = vsel %vm419, %v1393, 0
    %1410 = vmatprep.subr.mxu0 0.0
    %1411 = vmatpush1.msra.mxu0 %v1394
    %1412 = vmatprep.subr.mxu0 0.0
    %1413 = vmatpush1.msra.mxu0 %v1395
    %1414 = vmatprep.subr.mxu0 0.0
    %1415 = vmatpush1.msra.mxu0 %v1396
    %1416 = vmatprep.subr.mxu0 0.0
    %1417 = vmatpush1.msra.mxu0 %v1397
    %1418 = vmatprep.subr.mxu0 0.0
    %1419 = vmatpush1.msra.mxu0 0.0
    %1420 = vmatprep.subr.mxu0 0.0
    %1421 = vmatpush1.msra.mxu0 0.0
    %1422 = vmatprep.subr.mxu0 0.0
    %1423 = vmatpush1.msra.mxu0 0.0
    %1424 = vmatprep.subr.mxu0 0.0
    %1425 = vmatpush1.msra.mxu0 0.0
    %1426 = vmatprep.subr.mxu0 0.0
    %1427 = vmatpush1.msra.mxu0 0.0
    %1428 = vmatprep.subr.mxu0 0.0
    %1429 = vmatpush1.msra.mxu0 0.0
    %1430 = vmatprep.subr.mxu0 0.0
    %1431 = vmatpush1.msra.mxu0 0.0
    %1432 = vmatprep.subr.mxu0 0.0
    %1433 = vmatpush1.msra.mxu0 0.0
    %1434 = vmatprep.subr.mxu0 0.0
    %1435 = vmatpush1.msra.mxu0 0.0
    %1436 = vmatprep.subr.mxu0 0.0
    %1437 = vmatpush1.msra.mxu0 0.0
    %1438 = vmatprep.subr.mxu0 0.0
    %1439 = vmatpush1.msra.mxu0 0.0
    %1440 = vmatprep.subr.mxu0 0.0
    %1441 = vmatpush1.msra.mxu0 0.0
    %1442 = vmatprep.subr.mxu0 0.0
    %1443 = vmatpush1.msra.mxu0 0.0
    %1444 = vmatprep.subr.mxu0 0.0
    %1445 = vmatpush1.msra.mxu0 0.0
    %1446 = vmatprep.subr.mxu0 0.0
    %1447 = vmatpush1.msra.mxu0 0.0
    %1448 = vmatprep.subr.mxu0 0.0
    %1449 = vmatpush1.msra.mxu0 0.0
    %1450 = vmatprep.subr.mxu0 0.0
    %1451 = vmatpush1.msra.mxu0 0.0
    %1452 = vmatprep.subr.mxu0 0.0
    %1453 = vmatpush1.msra.mxu0 0.0
    %1454 = vmatprep.subr.mxu0 0.0
    %1455 = vmatpush1.msra.mxu0 0.0
    %1456 = vmatprep.subr.mxu0 0.0
    %1457 = vmatpush1.msra.mxu0 0.0
    %1458 = vmatprep.subr.mxu0 0.0
    %1459 = vmatpush1.msra.mxu0 0.0
    %1460 = vmatprep.subr.mxu0 0.0
    %1461 = vmatpush1.msra.mxu0 0.0
    %1462 = vmatprep.subr.mxu0 0.0
    %1463 = vmatpush1.msra.mxu0 0.0
    %1464 = vmatprep.subr.mxu0 0.0
    %1465 = vmatpush1.msra.mxu0 0.0
    %1466 = vmatprep.subr.mxu0 0.0
    %1467 = vmatpush1.msra.mxu0 0.0
    %1468 = vmatprep.subr.mxu0 0.0
    %1469 = vmatpush1.msra.mxu0 0.0
    %1470 = vmatprep.subr.mxu0 0.0
    %1471 = vmatpush1.msra.mxu0 0.0
    %1472 = vmatprep.subr.mxu0 0.0
    %1473 = vmatpush1.msra.mxu0 0.0
    %1474 = vmatprep.mubr.f32.mxu0 0.0
    %1475 = vmatmul.mubr.f32.gmra.mrb[0].mxu0 %v1399
    %v1476 = vpop.f32.mrb[0].mxu0
    %v1477 = vadd.f32 0.0, %v1476
    %v1478 = vpop.f32.mrb[0].mxu0
    %1479 = vmatprep.mubr.f32.mxu0 0.0
    %1480 = vmatmul.mubr.f32.gmra.mrb[0].mxu0 %v1402
    %v1481 = vpop.f32.mrb[0].mxu0
    %v1482 = vadd.f32 0.0, %v1481
    %v1483 = vpop.f32.mrb[0].mxu0
    %1484 = vmatprep.mubr.f32.mxu0 0.0
    %1485 = vmatmul.mubr.f32.gmra.mrb[0].mxu0 %v1405
    %v1486 = vpop.f32.mrb[0].mxu0
    %v1487 = vadd.f32 0.0, %v1486
    %v1488 = vpop.f32.mrb[0].mxu0
    %1489 = vmatprep.mubr.f32.mxu0 0.0
    %1490 = vmatmul.mubr.f32.gmra.mrb[0].mxu0 %v1408
    %v1491 = vpop.f32.mrb[0].mxu0
    %v1492 = vadd.f32 0.0, %v1491
    %v1493 = vpop.f32.mrb[0].mxu0
    %1494 = vdwg.mxu0
    %v1495 = vadd.f32 %v1386, %v1477
    %v1496 = vadd.f32 %v1387, %v1482
    %v1497 = vadd.f32 %v1388, %v1487
    %v1498 = vadd.f32 %v1389, %v1492
    %v1499 = vld [vmem:[#allocation2 + $0x9] sm:$0xff]
    %v1500 = vld [vmem:[#allocation2 + $0x11] sm:$0xff]
    %v1501 = vld [vmem:[#allocation2 + $0x29] sm:$0xff]
    %v1502 = vld [vmem:[#allocation2 + $0x31] sm:$0xff]
    %v1503 = vld [vmem:[#allocation3 + $0x148] sm:$0xff]
    %v1504 = vld [vmem:[#allocation3 + $0x150] sm:$0xff]
    %v1505 = vld [vmem:[#allocation3 + $0x158] sm:$0xff]
    %v1506 = vld [vmem:[#allocation3 + $0x160] sm:$0xff]
    %v1508 = vsel %vm419, %v1499, 0
    %v1511 = vsel %vm419, %v1500, 0
    %v1514 = vsel %vm419, %v1501, 0
    %v1517 = vsel %vm419, %v1502, 0
    %1519 = vmatprep.subr.mxu0 0.0
    %1520 = vmatpush1.msra.mxu0 %v1503
    %1521 = vmatprep.subr.mxu0 0.0
    %1522 = vmatpush1.msra.mxu0 %v1504
    %1523 = vmatprep.subr.mxu0 0.0
    %1524 = vmatpush1.msra.mxu0 %v1505
    %1525 = vmatprep.subr.mxu0 0.0
    %1526 = vmatpush1.msra.mxu0 %v1506
    %1527 = vmatprep.subr.mxu0 0.0
    %1528 = vmatpush1.msra.mxu0 0.0
    %1529 = vmatprep.subr.mxu0 0.0
    %1530 = vmatpush1.msra.mxu0 0.0
    %1531 = vmatprep.subr.mxu0 0.0
    %1532 = vmatpush1.msra.mxu0 0.0
    %1533 = vmatprep.subr.mxu0 0.0
    %1534 = vmatpush1.msra.mxu0 0.0
    %1535 = vmatprep.subr.mxu0 0.0
    %1536 = vmatpush1.msra.mxu0 0.0
    %1537 = vmatprep.subr.mxu0 0.0
    %1538 = vmatpush1.msra.mxu0 0.0
    %1539 = vmatprep.subr.mxu0 0.0
    %1540 = vmatpush1.msra.mxu0 0.0
    %1541 = vmatprep.subr.mxu0 0.0
    %1542 = vmatpush1.msra.mxu0 0.0
    %1543 = vmatprep.subr.mxu0 0.0
    %1544 = vmatpush1.msra.mxu0 0.0
    %1545 = vmatprep.subr.mxu0 0.0
    %1546 = vmatpush1.msra.mxu0 0.0
    %1547 = vmatprep.subr.mxu0 0.0
    %1548 = vmatpush1.msra.mxu0 0.0
    %1549 = vmatprep.subr.mxu0 0.0
    %1550 = vmatpush1.msra.mxu0 0.0
    %1551 = vmatprep.subr.mxu0 0.0
    %1552 = vmatpush1.msra.mxu0 0.0
    %1553 = vmatprep.subr.mxu0 0.0
    %1554 = vmatpush1.msra.mxu0 0.0
    %1555 = vmatprep.subr.mxu0 0.0
    %1556 = vmatpush1.msra.mxu0 0.0
    %1557 = vmatprep.subr.mxu0 0.0
    %1558 = vmatpush1.msra.mxu0 0.0
    %1559 = vmatprep.subr.mxu0 0.0
    %1560 = vmatpush1.msra.mxu0 0.0
    %1561 = vmatprep.subr.mxu0 0.0
    %1562 = vmatpush1.msra.mxu0 0.0
    %1563 = vmatprep.subr.mxu0 0.0
    %1564 = vmatpush1.msra.mxu0 0.0
    %1565 = vmatprep.subr.mxu0 0.0
    %1566 = vmatpush1.msra.mxu0 0.0
    %1567 = vmatprep.subr.mxu0 0.0
    %1568 = vmatpush1.msra.mxu0 0.0
    %1569 = vmatprep.subr.mxu0 0.0
    %1570 = vmatpush1.msra.mxu0 0.0
    %1571 = vmatprep.subr.mxu0 0.0
    %1572 = vmatpush1.msra.mxu0 0.0
    %1573 = vmatprep.subr.mxu0 0.0
    %1574 = vmatpush1.msra.mxu0 0.0
    %1575 = vmatprep.subr.mxu0 0.0
    %1576 = vmatpush1.msra.mxu0 0.0
    %1577 = vmatprep.subr.mxu0 0.0
    %1578 = vmatpush1.msra.mxu0 0.0
    %1579 = vmatprep.subr.mxu0 0.0
    %1580 = vmatpush1.msra.mxu0 0.0
    %1581 = vmatprep.subr.mxu0 0.0
    %1582 = vmatpush1.msra.mxu0 0.0
    %1583 = vmatprep.mubr.f32.mxu0 0.0
    %1584 = vmatmul.mubr.f32.gmra.mrb[0].mxu0 %v1508
    %v1585 = vpop.f32.mrb[0].mxu0
    %v1586 = vadd.f32 0.0, %v1585
    %v1587 = vpop.f32.mrb[0].mxu0
    %1588 = vmatprep.mubr.f32.mxu0 0.0
    %1589 = vmatmul.mubr.f32.gmra.mrb[0].mxu0 %v1511
    %v1590 = vpop.f32.mrb[0].mxu0
    %v1591 = vadd.f32 0.0, %v1590
    %v1592 = vpop.f32.mrb[0].mxu0
    %1593 = vmatprep.mubr.f32.mxu0 0.0
    %1594 = vmatmul.mubr.f32.gmra.mrb[0].mxu0 %v1514
    %v1595 = vpop.f32.mrb[0].mxu0
    %v1596 = vadd.f32 0.0, %v1595
    %v1597 = vpop.f32.mrb[0].mxu0
    %1598 = vmatprep.mubr.f32.mxu0 0.0
    %1599 = vmatmul.mubr.f32.gmra.mrb[0].mxu0 %v1517
    %v1600 = vpop.f32.mrb[0].mxu0
    %v1601 = vadd.f32 0.0, %v1600
    %v1602 = vpop.f32.mrb[0].mxu0
    %1603 = vdwg.mxu0
    %v1604 = vadd.f32 %v1495, %v1586
    %v1605 = vadd.f32 %v1496, %v1591
    %v1606 = vadd.f32 %v1497, %v1596
    %v1607 = vadd.f32 %v1498, %v1601
    %v1608 = vld [vmem:[#allocation2 + $0xa] sm:$0xff]
    %v1609 = vld [vmem:[#allocation2 + $0x12] sm:$0xff]
    %v1610 = vld [vmem:[#allocation2 + $0x2a] sm:$0xff]
    %v1611 = vld [vmem:[#allocation2 + $0x32] sm:$0xff]
    %v1612 = vld [vmem:[#allocation3 + $0x168] sm:$0xff]
    %v1613 = vld [vmem:[#allocation3 + $0x170] sm:$0xff]
    %v1614 = vld [vmem:[#allocation3 + $0x178] sm:$0xff]
    %v1615 = vld [vmem:[#allocation3 + $0x180] sm:$0xff]
    %v1617 = vsel %vm419, %v1608, 0
    %v1620 = vsel %vm419, %v1609, 0
    %v1623 = vsel %vm419, %v1610, 0
    %v1626 = vsel %vm419, %v1611, 0
    %1628 = vmatprep.subr.mxu0 0.0
    %1629 = vmatpush1.msra.mxu0 %v1612
    %1630 = vmatprep.subr.mxu0 0.0
    %1631 = vmatpush1.msra.mxu0 %v1613
    %1632 = vmatprep.subr.mxu0 0.0
    %1633 = vmatpush1.msra.mxu0 %v1614
    %1634 = vmatprep.subr.mxu0 0.0
    %1635 = vmatpush1.msra.mxu0 %v1615
    %1636 = vmatprep.subr.mxu0 0.0
    %1637 = vmatpush1.msra.mxu0 0.0
    %1638 = vmatprep.subr.mxu0 0.0
    %1639 = vmatpush1.msra.mxu0 0.0
    %1640 = vmatprep.subr.mxu0 0.0
    %1641 = vmatpush1.msra.mxu0 0.0
    %1642 = vmatprep.subr.mxu0 0.0
    %1643 = vmatpush1.msra.mxu0 0.0
    %1644 = vmatprep.subr.mxu0 0.0
    %1645 = vmatpush1.msra.mxu0 0.0
    %1646 = vmatprep.subr.mxu0 0.0
    %1647 = vmatpush1.msra.mxu0 0.0
    %1648 = vmatprep.subr.mxu0 0.0
    %1649 = vmatpush1.msra.mxu0 0.0
    %1650 = vmatprep.subr.mxu0 0.0
    %1651 = vmatpush1.msra.mxu0 0.0
    %1652 = vmatprep.subr.mxu0 0.0
    %1653 = vmatpush1.msra.mxu0 0.0
    %1654 = vmatprep.subr.mxu0 0.0
    %1655 = vmatpush1.msra.mxu0 0.0
    %1656 = vmatprep.subr.mxu0 0.0
    %1657 = vmatpush1.msra.mxu0 0.0
    %1658 = vmatprep.subr.mxu0 0.0
    %1659 = vmatpush1.msra.mxu0 0.0
    %1660 = vmatprep.subr.mxu0 0.0
    %1661 = vmatpush1.msra.mxu0 0.0
    %1662 = vmatprep.subr.mxu0 0.0
    %1663 = vmatpush1.msra.mxu0 0.0
    %1664 = vmatprep.subr.mxu0 0.0
    %1665 = vmatpush1.msra.mxu0 0.0
    %1666 = vmatprep.subr.mxu0 0.0
    %1667 = vmatpush1.msra.mxu0 0.0
    %1668 = vmatprep.subr.mxu0 0.0
    %1669 = vmatpush1.msra.mxu0 0.0
    %1670 = vmatprep.subr.mxu0 0.0
    %1671 = vmatpush1.msra.mxu0 0.0
    %1672 = vmatprep.subr.mxu0 0.0
    %1673 = vmatpush1.msra.mxu0 0.0
    %1674 = vmatprep.subr.mxu0 0.0
    %1675 = vmatpush1.msra.mxu0 0.0
    %1676 = vmatprep.subr.mxu0 0.0
    %1677 = vmatpush1.msra.mxu0 0.0
    %1678 = vmatprep.subr.mxu0 0.0
    %1679 = vmatpush1.msra.mxu0 0.0
    %1680 = vmatprep.subr.mxu0 0.0
    %1681 = vmatpush1.msra.mxu0 0.0
    %1682 = vmatprep.subr.mxu0 0.0
    %1683 = vmatpush1.msra.mxu0 0.0
    %1684 = vmatprep.subr.mxu0 0.0
    %1685 = vmatpush1.msra.mxu0 0.0
    %1686 = vmatprep.subr.mxu0 0.0
    %1687 = vmatpush1.msra.mxu0 0.0
    %1688 = vmatprep.subr.mxu0 0.0
    %1689 = vmatpush1.msra.mxu0 0.0
    %1690 = vmatprep.subr.mxu0 0.0
    %1691 = vmatpush1.msra.mxu0 0.0
    %1692 = vmatprep.mubr.f32.mxu0 0.0
    %1693 = vmatmul.mubr.f32.gmra.mrb[0].mxu0 %v1617
    %v1694 = vpop.f32.mrb[0].mxu0
    %v1695 = vadd.f32 0.0, %v1694
    %v1696 = vpop.f32.mrb[0].mxu0
    %1697 = vmatprep.mubr.f32.mxu0 0.0
    %1698 = vmatmul.mubr.f32.gmra.mrb[0].mxu0 %v1620
    %v1699 = vpop.f32.mrb[0].mxu0
    %v1700 = vadd.f32 0.0, %v1699
    %v1701 = vpop.f32.mrb[0].mxu0
    %1702 = vmatprep.mubr.f32.mxu0 0.0
    %1703 = vmatmul.mubr.f32.gmra.mrb[0].mxu0 %v1623
    %v1704 = vpop.f32.mrb[0].mxu0
    %v1705 = vadd.f32 0.0, %v1704
    %v1706 = vpop.f32.mrb[0].mxu0
    %1707 = vmatprep.mubr.f32.mxu0 0.0
    %1708 = vmatmul.mubr.f32.gmra.mrb[0].mxu0 %v1626
    %v1709 = vpop.f32.mrb[0].mxu0
    %v1710 = vadd.f32 0.0, %v1709
    %v1711 = vpop.f32.mrb[0].mxu0
    %1712 = vdwg.mxu0
    %v1713 = vadd.f32 %v1604, %v1695
    %v1714 = vadd.f32 %v1605, %v1700
    %v1715 = vadd.f32 %v1606, %v1705
    %v1716 = vadd.f32 %v1607, %v1710
    %v1717 = vld [vmem:[#allocation2 + $0xb] sm:$0xff]
    %v1718 = vld [vmem:[#allocation2 + $0x13] sm:$0xff]
    %v1719 = vld [vmem:[#allocation2 + $0x2b] sm:$0xff]
    %v1720 = vld [vmem:[#allocation2 + $0x33] sm:$0xff]
    %v1721 = vld [vmem:[#allocation3 + $0x188] sm:$0xff]
    %v1722 = vld [vmem:[#allocation3 + $0x190] sm:$0xff]
    %v1723 = vld [vmem:[#allocation3 + $0x198] sm:$0xff]
    %v1724 = vld [vmem:[#allocation3 + $0x1a0] sm:$0xff]
    %v1726 = vsel %vm419, %v1717, 0
    %v1729 = vsel %vm419, %v1718, 0
    %v1732 = vsel %vm419, %v1719, 0
    %v1735 = vsel %vm419, %v1720, 0
    %1737 = vmatprep.subr.mxu0 0.0
    %1738 = vmatpush1.msra.mxu0 %v1721
    %1739 = vmatprep.subr.mxu0 0.0
    %1740 = vmatpush1.msra.mxu0 %v1722
    %1741 = vmatprep.subr.mxu0 0.0
    %1742 = vmatpush1.msra.mxu0 %v1723
    %1743 = vmatprep.subr.mxu0 0.0
    %1744 = vmatpush1.msra.mxu0 %v1724
    %1745 = vmatprep.subr.mxu0 0.0
    %1746 = vmatpush1.msra.mxu0 0.0
    %1747 = vmatprep.subr.mxu0 0.0
    %1748 = vmatpush1.msra.mxu0 0.0
    %1749 = vmatprep.subr.mxu0 0.0
    %1750 = vmatpush1.msra.mxu0 0.0
    %1751 = vmatprep.subr.mxu0 0.0
    %1752 = vmatpush1.msra.mxu0 0.0
    %1753 = vmatprep.subr.mxu0 0.0
    %1754 = vmatpush1.msra.mxu0 0.0
    %1755 = vmatprep.subr.mxu0 0.0
    %1756 = vmatpush1.msra.mxu0 0.0
    %1757 = vmatprep.subr.mxu0 0.0
    %1758 = vmatpush1.msra.mxu0 0.0
    %1759 = vmatprep.subr.mxu0 0.0
    %1760 = vmatpush1.msra.mxu0 0.0
    %1761 = vmatprep.subr.mxu0 0.0
    %1762 = vmatpush1.msra.mxu0 0.0
    %1763 = vmatprep.subr.mxu0 0.0
    %1764 = vmatpush1.msra.mxu0 0.0
    %1765 = vmatprep.subr.mxu0 0.0
    %1766 = vmatpush1.msra.mxu0 0.0
    %1767 = vmatprep.subr.mxu0 0.0
    %1768 = vmatpush1.msra.mxu0 0.0
    %1769 = vmatprep.subr.mxu0 0.0
    %1770 = vmatpush1.msra.mxu0 0.0
    %1771 = vmatprep.subr.mxu0 0.0
    %1772 = vmatpush1.msra.mxu0 0.0
    %1773 = vmatprep.subr.mxu0 0.0
    %1774 = vmatpush1.msra.mxu0 0.0
    %1775 = vmatprep.subr.mxu0 0.0
    %1776 = vmatpush1.msra.mxu0 0.0
    %1777 = vmatprep.subr.mxu0 0.0
    %1778 = vmatpush1.msra.mxu0 0.0
    %1779 = vmatprep.subr.mxu0 0.0
    %1780 = vmatpush1.msra.mxu0 0.0
    %1781 = vmatprep.subr.mxu0 0.0
    %1782 = vmatpush1.msra.mxu0 0.0
    %1783 = vmatprep.subr.mxu0 0.0
    %1784 = vmatpush1.msra.mxu0 0.0
    %1785 = vmatprep.subr.mxu0 0.0
    %1786 = vmatpush1.msra.mxu0 0.0
    %1787 = vmatprep.subr.mxu0 0.0
    %1788 = vmatpush1.msra.mxu0 0.0
    %1789 = vmatprep.subr.mxu0 0.0
    %1790 = vmatpush1.msra.mxu0 0.0
    %1791 = vmatprep.subr.mxu0 0.0
    %1792 = vmatpush1.msra.mxu0 0.0
    %1793 = vmatprep.subr.mxu0 0.0
    %1794 = vmatpush1.msra.mxu0 0.0
    %1795 = vmatprep.subr.mxu0 0.0
    %1796 = vmatpush1.msra.mxu0 0.0
    %1797 = vmatprep.subr.mxu0 0.0
    %1798 = vmatpush1.msra.mxu0 0.0
    %1799 = vmatprep.subr.mxu0 0.0
    %1800 = vmatpush1.msra.mxu0 0.0
    %1801 = vmatprep.mubr.f32.mxu0 0.0
    %1802 = vmatmul.mubr.f32.gmra.mrb[0].mxu0 %v1726
    %v1803 = vpop.f32.mrb[0].mxu0
    %v1804 = vadd.f32 0.0, %v1803
    %v1805 = vpop.f32.mrb[0].mxu0
    %1806 = vmatprep.mubr.f32.mxu0 0.0
    %1807 = vmatmul.mubr.f32.gmra.mrb[0].mxu0 %v1729
    %v1808 = vpop.f32.mrb[0].mxu0
    %v1809 = vadd.f32 0.0, %v1808
    %v1810 = vpop.f32.mrb[0].mxu0
    %1811 = vmatprep.mubr.f32.mxu0 0.0
    %1812 = vmatmul.mubr.f32.gmra.mrb[0].mxu0 %v1732
    %v1813 = vpop.f32.mrb[0].mxu0
    %v1814 = vadd.f32 0.0, %v1813
    %v1815 = vpop.f32.mrb[0].mxu0
    %1816 = vmatprep.mubr.f32.mxu0 0.0
    %1817 = vmatmul.mubr.f32.gmra.mrb[0].mxu0 %v1735
    %v1818 = vpop.f32.mrb[0].mxu0
    %v1819 = vadd.f32 0.0, %v1818
    %v1820 = vpop.f32.mrb[0].mxu0
    %1821 = vdwg.mxu0
    %v1822 = vadd.f32 %v1713, %v1804
    %v1823 = vadd.f32 %v1714, %v1809
    %v1824 = vadd.f32 %v1715, %v1814
    %v1825 = vadd.f32 %v1716, %v1819
    %v1826 = vld [vmem:[#allocation3 + $0x1a8] sm:$0x1]
    %v1827 = vlaneseq
    %v1828 = vshrl.u32 %v1827, 7
    %v1829 = vsub.s32 0, %v1828
    %v1830 = vrot.slane %v1826, %v1829
    %v1831 = vadd.f32 %v1822, %v1830
    %v1832 = vadd.f32 %v1823, %v1830
    %v1833 = vadd.f32 %v1824, %v1830
    %v1834 = vadd.f32 %v1825, %v1830
    %v1835 = vxor.u32 %v1831, 2147483648
    %v1836 = vxor.u32 %v1832, 2147483648
    %v1837 = vxor.u32 %v1833, 2147483648
    %v1838 = vxor.u32 %v1834, 2147483648
    %v1839 = vmul.f32 %v1835, 1.442695
    %v1840 = vpow.pop %v1839
    %v1841 = vmul.f32 %v1836, 1.442695
    %v1842 = vpow.pop %v1841
    %v1843 = vmul.f32 %v1837, 1.442695
    %v1844 = vpow.pop %v1843
    %v1845 = vmul.f32 %v1838, 1.442695
    %v1846 = vpow.pop %v1845
    %v1847 = vadd.f32 %v1840, 1.0
    %v1848 = vadd.f32 %v1842, 1.0
    %v1849 = vadd.f32 %v1844, 1.0
    %v1850 = vadd.f32 %v1846, 1.0
    %v1851 = vrcp.pop %v1847
    %v1852 = vmul.f32 1.0, %v1851
    %v1853 = vrcp.pop %v1848
    %v1854 = vmul.f32 1.0, %v1853
    %v1855 = vrcp.pop %v1849
    %v1856 = vmul.f32 1.0, %v1855
    %v1857 = vrcp.pop %v1850
    %v1858 = vmul.f32 1.0, %v1857
    %v1859 = vmul.f32 %v868, %v1852
    %v1860 = vmul.f32 %v869, %v1854
    %v1861 = vmul.f32 %v870, %v1856
    %v1862 = vmul.f32 %v871, %v1858
    %1863 = vst [vmem:[%s2] sm:$0xff] %v1859
    %1864 = vst [vmem:[%s2 + $0x8] sm:$0xff] %v1860
    %1865 = vst [vmem:[%s2 + $0x10] sm:$0xff] %v1861
    %1866 = vst [vmem:[%s2 + $0x18] sm:$0xff] %v1862
    // Predicated region
    $region14: #{feature_extractor_forward.1} parent=1 // pred_check
      _
    $region15: #{feature_extractor_forward.1} parent=1 // pred_check_branch
      %1868 = sbr.rel (0) target = $region17
    $region16: #{feature_extractor_forward.1} parent=1 // pred_region
      _
    $region17: #{feature_extractor_forward.1} parent=1 // pred_fallthru
      _
    // Predicated region
    $region18: #{feature_extractor_forward.1} parent=1 // pred_check
      _
    $region19: #{feature_extractor_forward.1} parent=1 // pred_check_branch
      %1870 = sbr.rel (0) target = $region21
    $region20: #{feature_extractor_forward.1} parent=1 // pred_region
      _
    $region21: #{feature_extractor_forward.1} parent=1 // pred_fallthru
      _
    %1871 = vsyncpa [#allocation4], 1

</llo_original>
